<compile_context>
chip_gen: v7x
topology: tpu7x:2x2x1
jax: 0.10.0
libtpu: 0.0.40
codegen_flags: <defaults>
</compile_context>

<pallas_src>
import functools

import jax
import jax.numpy as jnp
import numpy as np
from jax import lax
from jax.experimental import pallas as pl
from jax.experimental.pallas import tpu as pltpu

_OFFSETS = tuple((dy, dx) for dy in (-1, 0, 1) for dx in (-1, 0, 1))


# ---------------------------------------------------------------------------
# In-kernel helpers (pure jnp on values already loaded from refs)
# ---------------------------------------------------------------------------
def _dft_pairs(slab, kri, hw, inverse):
    """fft2 / ifft2 ("backward" norm) of a planar slab.

    slab: (R, HW), rows [real components of all (sample, pair) ; imag comps].
    kri : (HW, 2*HW) = [KR | KI] fused Kronecker DFT matrix.
    Returns a slab with the same planar row layout.
    """
    r = slab.shape[0]
    khalf = r // 2
    ab = jnp.dot(slab, kri, preferred_element_type=jnp.float32)   # (R, 2*HW)
    a = ab[:, :hw]                                # x @ KR   (free lane slice)
    b = ab[:, hw:]                                # x @ KI
    # partner row of j is j +/- khalf -> a single sublane roll (XLU slot)
    b_part = pltpu.roll(b, shift=khalf, axis=0)
    sign = jnp.where(
        lax.broadcasted_iota(jnp.int32, (r, 1), 0) < khalf, 1.0, -1.0)
    if inverse:
        return (a - sign * b_part) * (1.0 / hw)
    return a + sign * b_part


def _conv3x3_bd(slab, w_bd, mask, patch_ref, w, hw):
    """Batched 3x3 conv (stride 1, pad 1, no bias) for all samples in the tile.

    slab (R=B*Cin, HW): the 9 lane-rolled copies are written into `patch_ref`
    at k*R row offsets (full-slab stores), masked once with the host-built
    expanded mask (9*R, HW), then contracted against the host-built
    block-diagonal weight (B*Ch, 9*R) in a single MXU matmul.
    """
    r = slab.shape[0]
    for k, (dy, dx) in enumerate(_OFFSETS):
        s = dy * w + dx
        shifted = slab if s == 0 else pltpu.roll(slab, shift=(-s) % hw, axis=1)
        patch_ref[k * r:(k + 1) * r, :] = shifted
    patches = patch_ref[0:9 * r, :] * mask                        # one VPU mult
    return jnp.dot(w_bd, patches, preferred_element_type=jnp.float32)


def _instnorm_lrelu(slab, eps=1e-5, slope=0.2):
    """InstanceNorm2d(affine=False) + LeakyReLU(0.2); one row = one (n, c)."""
    mu = jnp.mean(slab, axis=1, keepdims=True)
    d = slab - mu
    var = jnp.mean(d * d, axis=1, keepdims=True)
    y = d * lax.rsqrt(var + eps)
    return jnp.where(y >= 0, y, slope * y)


# ---------------------------------------------------------------------------
# Fused kernel: whole MultiDomainConvBlock for one batch tile
# ---------------------------------------------------------------------------
def _block_kernel(x_ref, kri_ref, m1_ref, m2_ref,
                  w1i_ref, w1k_ref, w2i_ref, w2k_ref,
                  out_ref, patch_ref, y_ref, *, W, HW, B, Ch, Cout):
    kri = kri_ref[...]
    hi = (B * Ch) // 2          # rows per even/odd chunk of a Ch-channel stream
    ha = (B * Cout) // 2        # rows per planar half of the combined slab

    # ---------------- layer 1 ----------------
    x = x_ref[0]                                                  # (B*Cin, HW)
    ksp1 = _dft_pairs(x, kri, HW, inverse=False)                  # fft2
    k1c = _conv3x3_bd(ksp1, w1k_ref[...], m1_ref[...], patch_ref, W, HW)
    bwd1 = _dft_pairs(k1c, kri, HW, inverse=True)                 # ifft2
    img1 = _conv3x3_bd(x, w1i_ref[...], m1_ref[...], patch_ref, W, HW)

    y_img = _instnorm_lrelu(img1)             # (B*Ch, HW), planar [even; odd]
    y_bwd = _instnorm_lrelu(bwd1)
    # TODO(synk): Dropout2d(p=0.0) is identity; non-zero dropout not implemented.

    # Scatter the two streams into the layer-2 planar layout via row-range
    # stores (no jnp.concatenate): [img-even | bwd-even | img-odd | bwd-odd].
    y_ref[0:hi, :] = y_img[0:hi, :]
    y_ref[hi:ha, :] = y_bwd[0:hi, :]
    y_ref[ha:ha + hi, :] = y_img[hi:, :]
    y_ref[ha + hi:, :] = y_bwd[hi:, :]

    # ---------------- layer 2 ----------------
    y = y_ref[...]                                                # (B*Cout, HW)
    ksp2 = _dft_pairs(y, kri, HW, inverse=False)
    k2c = _conv3x3_bd(ksp2, w2k_ref[...], m2_ref[...], patch_ref, W, HW)
    bwd2 = _dft_pairs(k2c, kri, HW, inverse=True)
    img2 = _conv3x3_bd(y, w2i_ref[...], m2_ref[...], patch_ref, W, HW)

    out_ref[0, 0] = _instnorm_lrelu(img2)     # image stream, planar rows
    out_ref[0, 1] = _instnorm_lrelu(bwd2)     # backward stream, planar rows


# ---------------------------------------------------------------------------
# Host-side constant / layout builders (trace-time numpy; static shapes only)
# ---------------------------------------------------------------------------
def _dft_kri(H, W):
    ah, aw = np.arange(H), np.arange(W)
    th = 2.0 * np.pi * np.outer(ah, ah) / H
    tw = 2.0 * np.pi * np.outer(aw, aw) / W
    ch, sh = np.cos(th), np.sin(th)
    cw, sw = np.cos(tw), np.sin(tw)
    kr = np.kron(ch, cw) - np.kron(sh, sw)
    ki = np.kron(ch, sw) + np.kron(sh, cw)
    return np.concatenate([kr, ki], axis=1).astype(np.float32)    # (HW, 2*HW)


def _border_masks(H, W):
    yy, xx = np.meshgrid(np.arange(H), np.arange(W), indexing="ij")
    yy, xx = yy.reshape(-1), xx.reshape(-1)
    m = np.zeros((9, H * W), np.float32)
    for k, (dy, dx) in enumerate(_OFFSETS):
        m[k] = ((yy + dy >= 0) & (yy + dy < H) &
                (xx + dx >= 0) & (xx + dx < W)).astype(np.float32)
    return m


def _planar_row(B, K):
    """Row of torch channel c of sample b in a planar (B*K, HW) slab."""
    half = (B * K) // 2

    def f(b, c):
        return (c % 2) * half + b * (K // 2) + c // 2
    return f


def _layer2_in_row(B, Cout):
    """Row of layer-1-output torch channel c in the combined layer-2 slab."""
    Ch = Cout // 2
    ha = (B * Cout) // 2
    hi = (B * Ch) // 2

    def f(b, c):
        stream, cc = (0, c) if c < Ch else (1, c - Ch)
        return (cc % 2) * ha + stream * hi + b * (Ch // 2) + cc // 2
    return f


def _bd_gather_idx(B, Ch, Cin, in_row, out_row):
    """Index table mapping (block-diag row, col) -> flat torch-weight index."""
    zero_slot = Ch * 9 * Cin
    G = np.full((B * Ch, 9 * B * Cin), zero_slot, np.int32)
    for b in range(B):
        for o in range(Ch):
            r = out_row(b, o)
            for k in range(9):
                for c in range(Cin):
                    G[r, k * B * Cin + in_row(b, c)] = (o * 9 + k) * Cin + c
    return G


def _bd_weight(w, G):
    """(Ch, Cin, 3, 3) torch weight -> block-diagonal (B*Ch, 9*B*Cin) matrix."""
    wf = jnp.transpose(w, (0, 2, 3, 1)).reshape(-1)    # index (o*9 + k)*Cin + c
    table = jnp.concatenate([wf, jnp.zeros((1,), wf.dtype)])
    return table[G].astype(jnp.float32)


# ---------------------------------------------------------------------------
# Wrapper: one pallas_call for the whole block
# ---------------------------------------------------------------------------
def multidomain_conv_block(x, params, b_tile=None):
    N, C, H, W = x.shape
    HW = H * W
    Ch = params["w1_img"].shape[0]
    Cout = 2 * Ch
    assert C % 2 == 0, "in_channels must form (real, imag) pairs"
    assert Cout % 4 == 0, "out_channels//2 must form (real, imag) pairs"
    assert params["w1_img"].shape[1:] == (C, 3, 3)
    assert params["w2_img"].shape[1:] == (Cout, 3, 3)   # 3x3/s1/p1 only

    if b_tile is None:
        # batch-stack so the DFT matmul M dimension (b_tile*C) approaches 256.
        # (For tiny N this collapses the grid to one step; with larger N keep
        # >= 2 "parallel" steps so both v7x TensorCores get work.)
        target = max(1, 256 // C)
        b_tile = max(d for d in range(1, N + 1) if N % d == 0 and d <= target)
    B = b_tile
    T = N // B

    # constants (computed once at trace time from static shapes)
    kri = jnp.asarray(_dft_kri(H, W))
    m9 = _border_masks(H, W)
    mask1 = jnp.asarray(np.repeat(m9, B * C, axis=0))       # (9*B*C,    HW)
    mask2 = jnp.asarray(np.repeat(m9, B * Cout, axis=0))    # (9*B*Cout, HW)

    out_row = _planar_row(B, Ch)
    in1 = _planar_row(B, C)
    in2 = _layer2_in_row(B, Cout)
    w1i = _bd_weight(params["w1_img"], _bd_gather_idx(B, Ch, C, in1, out_row))
    w1k = _bd_weight(params["w1_ksp"], _bd_gather_idx(B, Ch, C, in1, out_row))
    w2i = _bd_weight(params["w2_img"], _bd_gather_idx(B, Ch, Cout, in2, out_row))
    w2k = _bd_weight(params["w2_ksp"], _bd_gather_idx(B, Ch, Cout, in2, out_row))

    # (N, C, H, W) -> (T, B*C, HW), planar per tile (real rows, then imag rows)
    xt = x.reshape(T, B, C // 2, 2, HW)
    xt = jnp.transpose(xt, (0, 3, 1, 2, 4)).reshape(T, B * C, HW)

    const = lambda t: (0, 0)
    kern = functools.partial(_block_kernel, W=W, HW=HW, B=B, Ch=Ch, Cout=Cout)
    cmax = max(C, Cout)

    out = pl.pallas_call(
        kern,
        out_shape=jax.ShapeDtypeStruct((T, 2, B * Ch, HW), jnp.float32),
        grid=(T,),
        in_specs=[
            pl.BlockSpec((1, B * C, HW), lambda t: (t, 0, 0)),   # input tile
            pl.BlockSpec((HW, 2 * HW), const),                   # fused [KR|KI]
            pl.BlockSpec((9 * B * C, HW), const),                # layer-1 mask
            pl.BlockSpec((9 * B * Cout, HW), const),             # layer-2 mask
            pl.BlockSpec(w1i.shape, const),
            pl.BlockSpec(w1k.shape, const),
            pl.BlockSpec(w2i.shape, const),
            pl.BlockSpec(w2k.shape, const),
        ],
        out_specs=pl.BlockSpec((1, 2, B * Ch, HW), lambda t: (t, 0, 0, 0)),
        scratch_shapes=[
            pltpu.VMEM((9 * B * cmax, HW), jnp.float32),   # shared im2col scratch
            pltpu.VMEM((B * Cout, HW), jnp.float32),       # layer-2 input slab
        ],
        compiler_params=pltpu.CompilerParams(dimension_semantics=("parallel",)),
    )(xt, kri, mask1, mask2, w1i, w1k, w2i, w2k)

    # (T, 2, B*Ch, HW) planar -> (N, Cout, H, W) in PyTorch channel order
    o = out.reshape(T, 2, 2, B, Ch // 2, HW)        # (tile, stream, half, b, q)
    o = jnp.transpose(o, (0, 3, 1, 4, 2, 5))        # (tile, b, stream, q, half)
    return o.reshape(N, Cout, H, W)


# ---------------------------------------------------------------------------
# Pure-JAX reference (numerical sanity check only)
# ---------------------------------------------------------------------------
def _ref_conv(x, w):
    return lax.conv_general_dilated(
        x, w, (1, 1), ((1, 1), (1, 1)),
        dimension_numbers=("NCHW", "OIHW", "NCHW"),
        precision=lax.Precision.HIGHEST)


def _ref_fft_pairs(x, inverse):
    xc = x[:, 0::2].astype(jnp.complex64) + 1j * x[:, 1::2].astype(jnp.complex64)
    k = jnp.fft.ifftn(xc, axes=(-2, -1)) if inverse else jnp.fft.fftn(xc, axes=(-2, -1))
    out = jnp.stack([jnp.real(k), jnp.imag(k)], axis=2)   # (N, C//2, 2, H, W)
    n, p, _, h, w = out.shape
    return out.reshape(n, 2 * p, h, w).astype(jnp.float32)


def _ref_inorm_lrelu(x):
    mu = x.mean(axis=(-2, -1), keepdims=True)
    var = jnp.mean(jnp.square(x - mu), axis=(-2, -1), keepdims=True)
    y = (x - mu) / jnp.sqrt(var + 1e-5)
    return jnp.where(y >= 0, y, 0.2 * y)


def _ref_mdconv(x, w_img, w_ksp):
    k = _ref_fft_pairs(x, False)
    k = _ref_conv(k, w_ksp)
    b = _ref_fft_pairs(k, True)
    i = _ref_conv(x, w_img)
    return jnp.concatenate([i, b], axis=1)


def _ref_block(x, p):
    y = _ref_inorm_lrelu(_ref_mdconv(x, p["w1_img"], p["w1_ksp"]))
    y = _ref_inorm_lrelu(_ref_mdconv(y, p["w2_img"], p["w2_ksp"]))
    return y


if __name__ == "__main__":
    N, C, H, W = 2, 4, 16, 16          # in_channels = out_channels = 4
    out_channels = 4
    key = jax.random.PRNGKey(0)
    k1, k2, k3, k4, k5 = jax.random.split(key, 5)
    x = jax.random.normal(k1, (N, C, H, W), dtype=jnp.float32)

    def init_w(k, cout, cin):
        bound = 1.0 / float(np.sqrt(cin * 9.0))
        return jax.random.uniform(k, (cout, cin, 3, 3), jnp.float32, -bound, bound)

    params = {
        "w1_img": init_w(k2, out_channels // 2, C),
        "w1_ksp": init_w(k3, out_channels // 2, C),
        "w2_img": init_w(k4, out_channels // 2, out_channels),
        "w2_ksp": init_w(k5, out_channels // 2, out_channels),
    }

    out = jax.jit(multidomain_conv_block)(x, params)
    jax.block_until_ready(out)

    ref = _ref_block(x, params)
    assert out.shape == (N, out_channels, H, W)
    err = float(jnp.max(jnp.abs(out - ref)))
    assert jnp.allclose(out, ref, atol=5e-2, rtol=5e-2), err
    print("KERNEL_OK")
</pallas_src>

<mosaic_0001>
module attributes {stable_mosaic.version = 11 : i64} {
  func.func @_block_kernel(%arg0: i32, %arg1: memref<1x8x256xf32, #tpu.memory_space<vmem>>, %arg2: memref<256x512xf32, #tpu.memory_space<vmem>>, %arg3: memref<72x256xf32, #tpu.memory_space<vmem>>, %arg4: memref<72x256xf32, #tpu.memory_space<vmem>>, %arg5: memref<4x72xf32, #tpu.memory_space<vmem>>, %arg6: memref<4x72xf32, #tpu.memory_space<vmem>>, %arg7: memref<4x72xf32, #tpu.memory_space<vmem>>, %arg8: memref<4x72xf32, #tpu.memory_space<vmem>>, %arg9: memref<1x2x4x256xf32, #tpu.memory_space<vmem>>, %arg10: memref<72x256xf32, #tpu.memory_space<vmem>>, %arg11: memref<8x256xf32, #tpu.memory_space<vmem>>) attributes {dimension_semantics = [#tpu.dimension_semantics<parallel>], iteration_bounds = array<i64: 1>, scalar_prefetch = 0 : i64, scratch_operands = 2 : i64, tpu.core_type = #tpu.core_type<tc>, window_params = [{transform_indices = @transform_0, window_bounds = array<i64: 1, 8, 256>}, {pipeline_mode = #tpu.pipeline_mode<synchronous>, transform_indices = @transform_1, window_bounds = array<i64: 256, 512>}, {pipeline_mode = #tpu.pipeline_mode<synchronous>, transform_indices = @transform_2, window_bounds = array<i64: 72, 256>}, {pipeline_mode = #tpu.pipeline_mode<synchronous>, transform_indices = @transform_3, window_bounds = array<i64: 72, 256>}, {pipeline_mode = #tpu.pipeline_mode<synchronous>, transform_indices = @transform_4, window_bounds = array<i64: 4, 72>}, {pipeline_mode = #tpu.pipeline_mode<synchronous>, transform_indices = @transform_5, window_bounds = array<i64: 4, 72>}, {pipeline_mode = #tpu.pipeline_mode<synchronous>, transform_indices = @transform_6, window_bounds = array<i64: 4, 72>}, {pipeline_mode = #tpu.pipeline_mode<synchronous>, transform_indices = @transform_7, window_bounds = array<i64: 4, 72>}, {transform_indices = @transform_8, window_bounds = array<i64: 1, 2, 4, 256>}]} {
    %c0 = arith.constant 0 : index
    %c0_0 = arith.constant 0 : index
    %0 = vector.load %arg2[%c0, %c0_0] : memref<256x512xf32, #tpu.memory_space<vmem>>, vector<256x512xf32>
    %c0_1 = arith.constant 0 : index
    %c0_2 = arith.constant 0 : index
    %c0_3 = arith.constant 0 : index
    %1 = vector.load %arg1[%c0_1, %c0_2, %c0_3] : memref<1x8x256xf32, #tpu.memory_space<vmem>>, vector<1x8x256xf32>
    %2 = vector.shape_cast %1 : vector<1x8x256xf32> to vector<8x256xf32>
    %cst = arith.constant dense<0.000000e+00> : vector<8x512xf32>
    %3 = tpu.matmul %2, %0, %cst {dimension_numbers = #tpu.dot_dimension_numbers<[1], [0], [0], [1], [0, 0, 1, 1], [], []>} : vector<8x256xf32>, vector<256x512xf32>, vector<8x512xf32> -> vector<8x512xf32>
    %4 = vector.extract_strided_slice %3 {offsets = [0, 0], sizes = [8, 256], strides = [1, 1]} : vector<8x512xf32> to vector<8x256xf32>
    %5 = vector.extract_strided_slice %3 {offsets = [0, 256], sizes = [8, 256], strides = [1, 1]} : vector<8x512xf32> to vector<8x256xf32>
    %c4_i32 = arith.constant 4 : i32
    %6 = tpu.dynamic_rotate %5 by %c4_i32 dim 0 : vector<8x256xf32>, i32 -> vector<8x256xf32>
    %7 = tpu.iota {dimensions = array<i32: 0>} : vector<8x1xi32>
    %c4_i32_4 = arith.constant 4 : i32
    %8 = vector.broadcast %c4_i32_4 : i32 to vector<8x1xi32>
    %9 = arith.cmpi slt, %7, %8 : vector<8x1xi32>
    %cst_5 = arith.constant 1.000000e+00 : f32
    %cst_6 = arith.constant -1.000000e+00 : f32
    %10 = vector.broadcast %cst_5 : f32 to vector<8x1xf32>
    %11 = vector.broadcast %cst_6 : f32 to vector<8x1xf32>
    %12 = arith.select %9, %10, %11 : vector<8x1xi1>, vector<8x1xf32>
    %13 = vector.broadcast %12 : vector<8x1xf32> to vector<8x256xf32>
    %14 = arith.mulf %13, %6 : vector<8x256xf32>
    %15 = arith.addf %4, %14 : vector<8x256xf32>
    %c0_7 = arith.constant 0 : index
    %c0_8 = arith.constant 0 : index
    %16 = vector.load %arg6[%c0_7, %c0_8] : memref<4x72xf32, #tpu.memory_space<vmem>>, vector<4x72xf32>
    %c0_9 = arith.constant 0 : index
    %c0_10 = arith.constant 0 : index
    %17 = vector.load %arg3[%c0_9, %c0_10] : memref<72x256xf32, #tpu.memory_space<vmem>>, vector<72x256xf32>
    %c17_i32 = arith.constant 17 : i32
    %18 = tpu.dynamic_rotate %15 by %c17_i32 dim 1 : vector<8x256xf32>, i32 -> vector<8x256xf32>
    %c0_11 = arith.constant 0 : index
    %c0_12 = arith.constant 0 : index
    %19 = vector.load %arg10[%c0_11, %c0_12] : memref<72x256xf32, #tpu.memory_space<vmem>>, vector<8x256xf32>
    tpu.vector_store %arg10[%c0_11, %c0_12], %18 {strides = array<i32>} : memref<72x256xf32, #tpu.memory_space<vmem>>, vector<8x256xf32>,
    %c16_i32 = arith.constant 16 : i32
    %20 = tpu.dynamic_rotate %15 by %c16_i32 dim 1 : vector<8x256xf32>, i32 -> vector<8x256xf32>
    %c8 = arith.constant 8 : index
    %c0_13 = arith.constant 0 : index
    %21 = vector.load %arg10[%c8, %c0_13] : memref<72x256xf32, #tpu.memory_space<vmem>>, vector<8x256xf32>
    tpu.vector_store %arg10[%c8, %c0_13], %20 {strides = array<i32>} : memref<72x256xf32, #tpu.memory_space<vmem>>, vector<8x256xf32>,
    %c15_i32 = arith.constant 15 : i32
    %22 = tpu.dynamic_rotate %15 by %c15_i32 dim 1 : vector<8x256xf32>, i32 -> vector<8x256xf32>
    %c16 = arith.constant 16 : index
    %c0_14 = arith.constant 0 : index
    %23 = vector.load %arg10[%c16, %c0_14] : memref<72x256xf32, #tpu.memory_space<vmem>>, vector<8x256xf32>
    tpu.vector_store %arg10[%c16, %c0_14], %22 {strides = array<i32>} : memref<72x256xf32, #tpu.memory_space<vmem>>, vector<8x256xf32>,
    %c1_i32 = arith.constant 1 : i32
    %24 = tpu.dynamic_rotate %15 by %c1_i32 dim 1 : vector<8x256xf32>, i32 -> vector<8x256xf32>
    %c24 = arith.constant 24 : index
    %c0_15 = arith.constant 0 : index
    %25 = vector.load %arg10[%c24, %c0_15] : memref<72x256xf32, #tpu.memory_space<vmem>>, vector<8x256xf32>
    tpu.vector_store %arg10[%c24, %c0_15], %24 {strides = array<i32>} : memref<72x256xf32, #tpu.memory_space<vmem>>, vector<8x256xf32>,
    %c32 = arith.constant 32 : index
    %c0_16 = arith.constant 0 : index
    %26 = vector.load %arg10[%c32, %c0_16] : memref<72x256xf32, #tpu.memory_space<vmem>>, vector<8x256xf32>
    tpu.vector_store %arg10[%c32, %c0_16], %15 {strides = array<i32>} : memref<72x256xf32, #tpu.memory_space<vmem>>, vector<8x256xf32>,
    %c255_i32 = arith.constant 255 : i32
    %27 = tpu.dynamic_rotate %15 by %c255_i32 dim 1 : vector<8x256xf32>, i32 -> vector<8x256xf32>
    %c40 = arith.constant 40 : index
    %c0_17 = arith.constant 0 : index
    %28 = vector.load %arg10[%c40, %c0_17] : memref<72x256xf32, #tpu.memory_space<vmem>>, vector<8x256xf32>
    tpu.vector_store %arg10[%c40, %c0_17], %27 {strides = array<i32>} : memref<72x256xf32, #tpu.memory_space<vmem>>, vector<8x256xf32>,
    %c241_i32 = arith.constant 241 : i32
    %29 = tpu.dynamic_rotate %15 by %c241_i32 dim 1 : vector<8x256xf32>, i32 -> vector<8x256xf32>
    %c48 = arith.constant 48 : index
    %c0_18 = arith.constant 0 : index
    %30 = vector.load %arg10[%c48, %c0_18] : memref<72x256xf32, #tpu.memory_space<vmem>>, vector<8x256xf32>
    tpu.vector_store %arg10[%c48, %c0_18], %29 {strides = array<i32>} : memref<72x256xf32, #tpu.memory_space<vmem>>, vector<8x256xf32>,
    %c240_i32 = arith.constant 240 : i32
    %31 = tpu.dynamic_rotate %15 by %c240_i32 dim 1 : vector<8x256xf32>, i32 -> vector<8x256xf32>
    %c56 = arith.constant 56 : index
    %c0_19 = arith.constant 0 : index
    %32 = vector.load %arg10[%c56, %c0_19] : memref<72x256xf32, #tpu.memory_space<vmem>>, vector<8x256xf32>
    tpu.vector_store %arg10[%c56, %c0_19], %31 {strides = array<i32>} : memref<72x256xf32, #tpu.memory_space<vmem>>, vector<8x256xf32>,
    %c239_i32 = arith.constant 239 : i32
    %33 = tpu.dynamic_rotate %15 by %c239_i32 dim 1 : vector<8x256xf32>, i32 -> vector<8x256xf32>
    %c64 = arith.constant 64 : index
    %c0_20 = arith.constant 0 : index
    %34 = vector.load %arg10[%c64, %c0_20] : memref<72x256xf32, #tpu.memory_space<vmem>>, vector<8x256xf32>
    tpu.vector_store %arg10[%c64, %c0_20], %33 {strides = array<i32>} : memref<72x256xf32, #tpu.memory_space<vmem>>, vector<8x256xf32>,
    %c0_21 = arith.constant 0 : index
    %c0_22 = arith.constant 0 : index
    %35 = vector.load %arg10[%c0_21, %c0_22] : memref<72x256xf32, #tpu.memory_space<vmem>>, vector<72x256xf32>
    %36 = arith.mulf %35, %17 : vector<72x256xf32>
    %cst_23 = arith.constant dense<0.000000e+00> : vector<4x256xf32>
    %37 = tpu.matmul %16, %36, %cst_23 {dimension_numbers = #tpu.dot_dimension_numbers<[1], [0], [0], [1], [0, 0, 1, 1], [], []>} : vector<4x72xf32>, vector<72x256xf32>, vector<4x256xf32> -> vector<4x256xf32>
    %cst_24 = arith.constant dense<0.000000e+00> : vector<4x512xf32>
    %38 = tpu.matmul %37, %0, %cst_24 {dimension_numbers = #tpu.dot_dimension_numbers<[1], [0], [0], [1], [0, 0, 1, 1], [], []>} : vector<4x256xf32>, vector<256x512xf32>, vector<4x512xf32> -> vector<4x512xf32>
    %39 = vector.extract_strided_slice %38 {offsets = [0, 0], sizes = [4, 256], strides = [1, 1]} : vector<4x512xf32> to vector<4x256xf32>
    %40 = vector.extract_strided_slice %38 {offsets = [0, 256], sizes = [4, 256], strides = [1, 1]} : vector<4x512xf32> to vector<4x256xf32>
    %c2_i32 = arith.constant 2 : i32
    %41 = tpu.dynamic_rotate %40 by %c2_i32 dim 0 : vector<4x256xf32>, i32 -> vector<4x256xf32>
    %42 = tpu.iota {dimensions = array<i32: 0>} : vector<4x1xi32>
    %c2_i32_25 = arith.constant 2 : i32
    %43 = vector.broadcast %c2_i32_25 : i32 to vector<4x1xi32>
    %44 = arith.cmpi slt, %42, %43 : vector<4x1xi32>
    %cst_26 = arith.constant 1.000000e+00 : f32
    %cst_27 = arith.constant -1.000000e+00 : f32
    %45 = vector.broadcast %cst_26 : f32 to vector<4x1xf32>
    %46 = vector.broadcast %cst_27 : f32 to vector<4x1xf32>
    %47 = arith.select %44, %45, %46 : vector<4x1xi1>, vector<4x1xf32>
    %48 = vector.broadcast %47 : vector<4x1xf32> to vector<4x256xf32>
    %49 = arith.mulf %48, %41 : vector<4x256xf32>
    %50 = arith.subf %39, %49 : vector<4x256xf32>
    %cst_28 = arith.constant 3.906250e-03 : f32
    %51 = vector.broadcast %cst_28 : f32 to vector<4x256xf32>
    %52 = arith.mulf %50, %51 : vector<4x256xf32>
    %c0_29 = arith.constant 0 : index
    %c0_30 = arith.constant 0 : index
    %53 = vector.load %arg5[%c0_29, %c0_30] : memref<4x72xf32, #tpu.memory_space<vmem>>, vector<4x72xf32>
    %c0_31 = arith.constant 0 : index
    %c0_32 = arith.constant 0 : index
    %54 = vector.load %arg3[%c0_31, %c0_32] : memref<72x256xf32, #tpu.memory_space<vmem>>, vector<72x256xf32>
    %c17_i32_33 = arith.constant 17 : i32
    %55 = tpu.dynamic_rotate %2 by %c17_i32_33 dim 1 : vector<8x256xf32>, i32 -> vector<8x256xf32>
    %c0_34 = arith.constant 0 : index
    %c0_35 = arith.constant 0 : index
    %56 = vector.load %arg10[%c0_34, %c0_35] : memref<72x256xf32, #tpu.memory_space<vmem>>, vector<8x256xf32>
    tpu.vector_store %arg10[%c0_34, %c0_35], %55 {strides = array<i32>} : memref<72x256xf32, #tpu.memory_space<vmem>>, vector<8x256xf32>,
    %c16_i32_36 = arith.constant 16 : i32
    %57 = tpu.dynamic_rotate %2 by %c16_i32_36 dim 1 : vector<8x256xf32>, i32 -> vector<8x256xf32>
    %c8_37 = arith.constant 8 : index
    %c0_38 = arith.constant 0 : index
    %58 = vector.load %arg10[%c8_37, %c0_38] : memref<72x256xf32, #tpu.memory_space<vmem>>, vector<8x256xf32>
    tpu.vector_store %arg10[%c8_37, %c0_38], %57 {strides = array<i32>} : memref<72x256xf32, #tpu.memory_space<vmem>>, vector<8x256xf32>,
    %c15_i32_39 = arith.constant 15 : i32
    %59 = tpu.dynamic_rotate %2 by %c15_i32_39 dim 1 : vector<8x256xf32>, i32 -> vector<8x256xf32>
    %c16_40 = arith.constant 16 : index
    %c0_41 = arith.constant 0 : index
    %60 = vector.load %arg10[%c16_40, %c0_41] : memref<72x256xf32, #tpu.memory_space<vmem>>, vector<8x256xf32>
    tpu.vector_store %arg10[%c16_40, %c0_41], %59 {strides = array<i32>} : memref<72x256xf32, #tpu.memory_space<vmem>>, vector<8x256xf32>,
    %c1_i32_42 = arith.constant 1 : i32
    %61 = tpu.dynamic_rotate %2 by %c1_i32_42 dim 1 : vector<8x256xf32>, i32 -> vector<8x256xf32>
    %c24_43 = arith.constant 24 : index
    %c0_44 = arith.constant 0 : index
    %62 = vector.load %arg10[%c24_43, %c0_44] : memref<72x256xf32, #tpu.memory_space<vmem>>, vector<8x256xf32>
    tpu.vector_store %arg10[%c24_43, %c0_44], %61 {strides = array<i32>} : memref<72x256xf32, #tpu.memory_space<vmem>>, vector<8x256xf32>,
    %c32_45 = arith.constant 32 : index
    %c0_46 = arith.constant 0 : index
    %63 = vector.load %arg10[%c32_45, %c0_46] : memref<72x256xf32, #tpu.memory_space<vmem>>, vector<8x256xf32>
    tpu.vector_store %arg10[%c32_45, %c0_46], %2 {strides = array<i32>} : memref<72x256xf32, #tpu.memory_space<vmem>>, vector<8x256xf32>,
    %c255_i32_47 = arith.constant 255 : i32
    %64 = tpu.dynamic_rotate %2 by %c255_i32_47 dim 1 : vector<8x256xf32>, i32 -> vector<8x256xf32>
    %c40_48 = arith.constant 40 : index
    %c0_49 = arith.constant 0 : index
    %65 = vector.load %arg10[%c40_48, %c0_49] : memref<72x256xf32, #tpu.memory_space<vmem>>, vector<8x256xf32>
    tpu.vector_store %arg10[%c40_48, %c0_49], %64 {strides = array<i32>} : memref<72x256xf32, #tpu.memory_space<vmem>>, vector<8x256xf32>,
    %c241_i32_50 = arith.constant 241 : i32
    %66 = tpu.dynamic_rotate %2 by %c241_i32_50 dim 1 : vector<8x256xf32>, i32 -> vector<8x256xf32>
    %c48_51 = arith.constant 48 : index
    %c0_52 = arith.constant 0 : index
    %67 = vector.load %arg10[%c48_51, %c0_52] : memref<72x256xf32, #tpu.memory_space<vmem>>, vector<8x256xf32>
    tpu.vector_store %arg10[%c48_51, %c0_52], %66 {strides = array<i32>} : memref<72x256xf32, #tpu.memory_space<vmem>>, vector<8x256xf32>,
    %c240_i32_53 = arith.constant 240 : i32
    %68 = tpu.dynamic_rotate %2 by %c240_i32_53 dim 1 : vector<8x256xf32>, i32 -> vector<8x256xf32>
    %c56_54 = arith.constant 56 : index
    %c0_55 = arith.constant 0 : index
    %69 = vector.load %arg10[%c56_54, %c0_55] : memref<72x256xf32, #tpu.memory_space<vmem>>, vector<8x256xf32>
    tpu.vector_store %arg10[%c56_54, %c0_55], %68 {strides = array<i32>} : memref<72x256xf32, #tpu.memory_space<vmem>>, vector<8x256xf32>,
    %c239_i32_56 = arith.constant 239 : i32
    %70 = tpu.dynamic_rotate %2 by %c239_i32_56 dim 1 : vector<8x256xf32>, i32 -> vector<8x256xf32>
    %c64_57 = arith.constant 64 : index
    %c0_58 = arith.constant 0 : index
    %71 = vector.load %arg10[%c64_57, %c0_58] : memref<72x256xf32, #tpu.memory_space<vmem>>, vector<8x256xf32>
    tpu.vector_store %arg10[%c64_57, %c0_58], %70 {strides = array<i32>} : memref<72x256xf32, #tpu.memory_space<vmem>>, vector<8x256xf32>,
    %c0_59 = arith.constant 0 : index
    %c0_60 = arith.constant 0 : index
    %72 = vector.load %arg10[%c0_59, %c0_60] : memref<72x256xf32, #tpu.memory_space<vmem>>, vector<72x256xf32>
    %73 = arith.mulf %72, %54 : vector<72x256xf32>
    %cst_61 = arith.constant dense<0.000000e+00> : vector<4x256xf32>
    %74 = tpu.matmul %53, %73, %cst_61 {dimension_numbers = #tpu.dot_dimension_numbers<[1], [0], [0], [1], [0, 0, 1, 1], [], []>} : vector<4x72xf32>, vector<72x256xf32>, vector<4x256xf32> -> vector<4x256xf32>
    %cst_62 = arith.constant dense<0.000000e+00> : vector<4xf32>
    %75 = vector.multi_reduction <add>, %74, %cst_62 [1] : vector<4x256xf32> to vector<4xf32>
    %76 = vector.shape_cast %75 : vector<4xf32> to vector<4x1xf32>
    %cst_63 = arith.constant 2.560000e+02 : f32
    %77 = vector.broadcast %cst_63 : f32 to vector<4x1xf32>
    %78 = arith.divf %76, %77 : vector<4x1xf32>
    %79 = vector.broadcast %78 : vector<4x1xf32> to vector<4x256xf32>
    %80 = arith.subf %74, %79 : vector<4x256xf32>
    %81 = arith.mulf %80, %80 : vector<4x256xf32>
    %cst_64 = arith.constant dense<0.000000e+00> : vector<4xf32>
    %82 = vector.multi_reduction <add>, %81, %cst_64 [1] : vector<4x256xf32> to vector<4xf32>
    %83 = vector.shape_cast %82 : vector<4xf32> to vector<4x1xf32>
    %cst_65 = arith.constant 2.560000e+02 : f32
    %84 = vector.broadcast %cst_65 : f32 to vector<4x1xf32>
    %85 = arith.divf %83, %84 : vector<4x1xf32>
    %cst_66 = arith.constant 9.99999974E-6 : f32
    %86 = vector.broadcast %cst_66 : f32 to vector<4x1xf32>
    %87 = arith.addf %85, %86 : vector<4x1xf32>
    %88 = math.rsqrt %87 : vector<4x1xf32>
    %89 = vector.broadcast %88 : vector<4x1xf32> to vector<4x256xf32>
    %90 = arith.mulf %80, %89 : vector<4x256xf32>
    %cst_67 = arith.constant 0.000000e+00 : f32
    %91 = vector.broadcast %cst_67 : f32 to vector<4x256xf32>
    %92 = arith.cmpf oge, %90, %91 : vector<4x256xf32>
    %cst_68 = arith.constant 2.000000e-01 : f32
    %93 = vector.broadcast %cst_68 : f32 to vector<4x256xf32>
    %94 = arith.mulf %93, %90 : vector<4x256xf32>
    %95 = arith.select %92, %90, %94 : vector<4x256xi1>, vector<4x256xf32>
    %cst_69 = arith.constant dense<0.000000e+00> : vector<4xf32>
    %96 = vector.multi_reduction <add>, %52, %cst_69 [1] : vector<4x256xf32> to vector<4xf32>
    %97 = vector.shape_cast %96 : vector<4xf32> to vector<4x1xf32>
    %cst_70 = arith.constant 2.560000e+02 : f32
    %98 = vector.broadcast %cst_70 : f32 to vector<4x1xf32>
    %99 = arith.divf %97, %98 : vector<4x1xf32>
    %100 = vector.broadcast %99 : vector<4x1xf32> to vector<4x256xf32>
    %101 = arith.subf %52, %100 : vector<4x256xf32>
    %102 = arith.mulf %101, %101 : vector<4x256xf32>
    %cst_71 = arith.constant dense<0.000000e+00> : vector<4xf32>
    %103 = vector.multi_reduction <add>, %102, %cst_71 [1] : vector<4x256xf32> to vector<4xf32>
    %104 = vector.shape_cast %103 : vector<4xf32> to vector<4x1xf32>
    %cst_72 = arith.constant 2.560000e+02 : f32
    %105 = vector.broadcast %cst_72 : f32 to vector<4x1xf32>
    %106 = arith.divf %104, %105 : vector<4x1xf32>
    %cst_73 = arith.constant 9.99999974E-6 : f32
    %107 = vector.broadcast %cst_73 : f32 to vector<4x1xf32>
    %108 = arith.addf %106, %107 : vector<4x1xf32>
    %109 = math.rsqrt %108 : vector<4x1xf32>
    %110 = vector.broadcast %109 : vector<4x1xf32> to vector<4x256xf32>
    %111 = arith.mulf %101, %110 : vector<4x256xf32>
    %cst_74 = arith.constant 0.000000e+00 : f32
    %112 = vector.broadcast %cst_74 : f32 to vector<4x256xf32>
    %113 = arith.cmpf oge, %111, %112 : vector<4x256xf32>
    %cst_75 = arith.constant 2.000000e-01 : f32
    %114 = vector.broadcast %cst_75 : f32 to vector<4x256xf32>
    %115 = arith.mulf %114, %111 : vector<4x256xf32>
    %116 = arith.select %113, %111, %115 : vector<4x256xi1>, vector<4x256xf32>
    %117 = vector.extract_strided_slice %95 {offsets = [0, 0], sizes = [2, 256], strides = [1, 1]} : vector<4x256xf32> to vector<2x256xf32>
    %c0_76 = arith.constant 0 : index
    %c0_77 = arith.constant 0 : index
    %118 = vector.load %arg11[%c0_76, %c0_77] : memref<8x256xf32, #tpu.memory_space<vmem>>, vector<2x256xf32>
    tpu.vector_store %arg11[%c0_76, %c0_77], %117 {strides = array<i32>} : memref<8x256xf32, #tpu.memory_space<vmem>>, vector<2x256xf32>,
    %119 = vector.extract_strided_slice %116 {offsets = [0, 0], sizes = [2, 256], strides = [1, 1]} : vector<4x256xf32> to vector<2x256xf32>
    %c2 = arith.constant 2 : index
    %c0_78 = arith.constant 0 : index
    %120 = vector.load %arg11[%c2, %c0_78] : memref<8x256xf32, #tpu.memory_space<vmem>>, vector<2x256xf32>
    tpu.vector_store %arg11[%c2, %c0_78], %119 {strides = array<i32>} : memref<8x256xf32, #tpu.memory_space<vmem>>, vector<2x256xf32>,
    %121 = vector.extract_strided_slice %95 {offsets = [2, 0], sizes = [2, 256], strides = [1, 1]} : vector<4x256xf32> to vector<2x256xf32>
    %c4 = arith.constant 4 : index
    %c0_79 = arith.constant 0 : index
    %122 = vector.load %arg11[%c4, %c0_79] : memref<8x256xf32, #tpu.memory_space<vmem>>, vector<2x256xf32>
    tpu.vector_store %arg11[%c4, %c0_79], %121 {strides = array<i32>} : memref<8x256xf32, #tpu.memory_space<vmem>>, vector<2x256xf32>,
    %123 = vector.extract_strided_slice %116 {offsets = [2, 0], sizes = [2, 256], strides = [1, 1]} : vector<4x256xf32> to vector<2x256xf32>
    %c6 = arith.constant 6 : index
    %c0_80 = arith.constant 0 : index
    %124 = vector.load %arg11[%c6, %c0_80] : memref<8x256xf32, #tpu.memory_space<vmem>>, vector<2x256xf32>
    tpu.vector_store %arg11[%c6, %c0_80], %123 {strides = array<i32>} : memref<8x256xf32, #tpu.memory_space<vmem>>, vector<2x256xf32>,
    %c0_81 = arith.constant 0 : index
    %c0_82 = arith.constant 0 : index
    %125 = vector.load %arg11[%c0_81, %c0_82] : memref<8x256xf32, #tpu.memory_space<vmem>>, vector<8x256xf32>
    %cst_83 = arith.constant dense<0.000000e+00> : vector<8x512xf32>
    %126 = tpu.matmul %125, %0, %cst_83 {dimension_numbers = #tpu.dot_dimension_numbers<[1], [0], [0], [1], [0, 0, 1, 1], [], []>} : vector<8x256xf32>, vector<256x512xf32>, vector<8x512xf32> -> vector<8x512xf32>
    %127 = vector.extract_strided_slice %126 {offsets = [0, 0], sizes = [8, 256], strides = [1, 1]} : vector<8x512xf32> to vector<8x256xf32>
    %128 = vector.extract_strided_slice %126 {offsets = [0, 256], sizes = [8, 256], strides = [1, 1]} : vector<8x512xf32> to vector<8x256xf32>
    %c4_i32_84 = arith.constant 4 : i32
    %129 = tpu.dynamic_rotate %128 by %c4_i32_84 dim 0 : vector<8x256xf32>, i32 -> vector<8x256xf32>
    %130 = tpu.iota {dimensions = array<i32: 0>} : vector<8x1xi32>
    %c4_i32_85 = arith.constant 4 : i32
    %131 = vector.broadcast %c4_i32_85 : i32 to vector<8x1xi32>
    %132 = arith.cmpi slt, %130, %131 : vector<8x1xi32>
    %cst_86 = arith.constant 1.000000e+00 : f32
    %cst_87 = arith.constant -1.000000e+00 : f32
    %133 = vector.broadcast %cst_86 : f32 to vector<8x1xf32>
    %134 = vector.broadcast %cst_87 : f32 to vector<8x1xf32>
    %135 = arith.select %132, %133, %134 : vector<8x1xi1>, vector<8x1xf32>
    %136 = vector.broadcast %135 : vector<8x1xf32> to vector<8x256xf32>
    %137 = arith.mulf %136, %129 : vector<8x256xf32>
    %138 = arith.addf %127, %137 : vector<8x256xf32>
    %c0_88 = arith.constant 0 : index
    %c0_89 = arith.constant 0 : index
    %139 = vector.load %arg8[%c0_88, %c0_89] : memref<4x72xf32, #tpu.memory_space<vmem>>, vector<4x72xf32>
    %c0_90 = arith.constant 0 : index
    %c0_91 = arith.constant 0 : index
    %140 = vector.load %arg4[%c0_90, %c0_91] : memref<72x256xf32, #tpu.memory_space<vmem>>, vector<72x256xf32>
    %c17_i32_92 = arith.constant 17 : i32
    %141 = tpu.dynamic_rotate %138 by %c17_i32_92 dim 1 : vector<8x256xf32>, i32 -> vector<8x256xf32>
    %c0_93 = arith.constant 0 : index
    %c0_94 = arith.constant 0 : index
    %142 = vector.load %arg10[%c0_93, %c0_94] : memref<72x256xf32, #tpu.memory_space<vmem>>, vector<8x256xf32>
    tpu.vector_store %arg10[%c0_93, %c0_94], %141 {strides = array<i32>} : memref<72x256xf32, #tpu.memory_space<vmem>>, vector<8x256xf32>,
    %c16_i32_95 = arith.constant 16 : i32
    %143 = tpu.dynamic_rotate %138 by %c16_i32_95 dim 1 : vector<8x256xf32>, i32 -> vector<8x256xf32>
    %c8_96 = arith.constant 8 : index
    %c0_97 = arith.constant 0 : index
    %144 = vector.load %arg10[%c8_96, %c0_97] : memref<72x256xf32, #tpu.memory_space<vmem>>, vector<8x256xf32>
    tpu.vector_store %arg10[%c8_96, %c0_97], %143 {strides = array<i32>} : memref<72x256xf32, #tpu.memory_space<vmem>>, vector<8x256xf32>,
    %c15_i32_98 = arith.constant 15 : i32
    %145 = tpu.dynamic_rotate %138 by %c15_i32_98 dim 1 : vector<8x256xf32>, i32 -> vector<8x256xf32>
    %c16_99 = arith.constant 16 : index
    %c0_100 = arith.constant 0 : index
    %146 = vector.load %arg10[%c16_99, %c0_100] : memref<72x256xf32, #tpu.memory_space<vmem>>, vector<8x256xf32>
    tpu.vector_store %arg10[%c16_99, %c0_100], %145 {strides = array<i32>} : memref<72x256xf32, #tpu.memory_space<vmem>>, vector<8x256xf32>,
    %c1_i32_101 = arith.constant 1 : i32
    %147 = tpu.dynamic_rotate %138 by %c1_i32_101 dim 1 : vector<8x256xf32>, i32 -> vector<8x256xf32>
    %c24_102 = arith.constant 24 : index
    %c0_103 = arith.constant 0 : index
    %148 = vector.load %arg10[%c24_102, %c0_103] : memref<72x256xf32, #tpu.memory_space<vmem>>, vector<8x256xf32>
    tpu.vector_store %arg10[%c24_102, %c0_103], %147 {strides = array<i32>} : memref<72x256xf32, #tpu.memory_space<vmem>>, vector<8x256xf32>,
    %c32_104 = arith.constant 32 : index
    %c0_105 = arith.constant 0 : index
    %149 = vector.load %arg10[%c32_104, %c0_105] : memref<72x256xf32, #tpu.memory_space<vmem>>, vector<8x256xf32>
    tpu.vector_store %arg10[%c32_104, %c0_105], %138 {strides = array<i32>} : memref<72x256xf32, #tpu.memory_space<vmem>>, vector<8x256xf32>,
    %c255_i32_106 = arith.constant 255 : i32
    %150 = tpu.dynamic_rotate %138 by %c255_i32_106 dim 1 : vector<8x256xf32>, i32 -> vector<8x256xf32>
    %c40_107 = arith.constant 40 : index
    %c0_108 = arith.constant 0 : index
    %151 = vector.load %arg10[%c40_107, %c0_108] : memref<72x256xf32, #tpu.memory_space<vmem>>, vector<8x256xf32>
    tpu.vector_store %arg10[%c40_107, %c0_108], %150 {strides = array<i32>} : memref<72x256xf32, #tpu.memory_space<vmem>>, vector<8x256xf32>,
    %c241_i32_109 = arith.constant 241 : i32
    %152 = tpu.dynamic_rotate %138 by %c241_i32_109 dim 1 : vector<8x256xf32>, i32 -> vector<8x256xf32>
    %c48_110 = arith.constant 48 : index
    %c0_111 = arith.constant 0 : index
    %153 = vector.load %arg10[%c48_110, %c0_111] : memref<72x256xf32, #tpu.memory_space<vmem>>, vector<8x256xf32>
    tpu.vector_store %arg10[%c48_110, %c0_111], %152 {strides = array<i32>} : memref<72x256xf32, #tpu.memory_space<vmem>>, vector<8x256xf32>,
    %c240_i32_112 = arith.constant 240 : i32
    %154 = tpu.dynamic_rotate %138 by %c240_i32_112 dim 1 : vector<8x256xf32>, i32 -> vector<8x256xf32>
    %c56_113 = arith.constant 56 : index
    %c0_114 = arith.constant 0 : index
    %155 = vector.load %arg10[%c56_113, %c0_114] : memref<72x256xf32, #tpu.memory_space<vmem>>, vector<8x256xf32>
    tpu.vector_store %arg10[%c56_113, %c0_114], %154 {strides = array<i32>} : memref<72x256xf32, #tpu.memory_space<vmem>>, vector<8x256xf32>,
    %c239_i32_115 = arith.constant 239 : i32
    %156 = tpu.dynamic_rotate %138 by %c239_i32_115 dim 1 : vector<8x256xf32>, i32 -> vector<8x256xf32>
    %c64_116 = arith.constant 64 : index
    %c0_117 = arith.constant 0 : index
    %157 = vector.load %arg10[%c64_116, %c0_117] : memref<72x256xf32, #tpu.memory_space<vmem>>, vector<8x256xf32>
    tpu.vector_store %arg10[%c64_116, %c0_117], %156 {strides = array<i32>} : memref<72x256xf32, #tpu.memory_space<vmem>>, vector<8x256xf32>,
    %c0_118 = arith.constant 0 : index
    %c0_119 = arith.constant 0 : index
    %158 = vector.load %arg10[%c0_118, %c0_119] : memref<72x256xf32, #tpu.memory_space<vmem>>, vector<72x256xf32>
    %159 = arith.mulf %158, %140 : vector<72x256xf32>
    %cst_120 = arith.constant dense<0.000000e+00> : vector<4x256xf32>
    %160 = tpu.matmul %139, %159, %cst_120 {dimension_numbers = #tpu.dot_dimension_numbers<[1], [0], [0], [1], [0, 0, 1, 1], [], []>} : vector<4x72xf32>, vector<72x256xf32>, vector<4x256xf32> -> vector<4x256xf32>
    %cst_121 = arith.constant dense<0.000000e+00> : vector<4x512xf32>
    %161 = tpu.matmul %160, %0, %cst_121 {dimension_numbers = #tpu.dot_dimension_numbers<[1], [0], [0], [1], [0, 0, 1, 1], [], []>} : vector<4x256xf32>, vector<256x512xf32>, vector<4x512xf32> -> vector<4x512xf32>
    %162 = vector.extract_strided_slice %161 {offsets = [0, 0], sizes = [4, 256], strides = [1, 1]} : vector<4x512xf32> to vector<4x256xf32>
    %163 = vector.extract_strided_slice %161 {offsets = [0, 256], sizes = [4, 256], strides = [1, 1]} : vector<4x512xf32> to vector<4x256xf32>
    %c2_i32_122 = arith.constant 2 : i32
    %164 = tpu.dynamic_rotate %163 by %c2_i32_122 dim 0 : vector<4x256xf32>, i32 -> vector<4x256xf32>
    %165 = tpu.iota {dimensions = array<i32: 0>} : vector<4x1xi32>
    %c2_i32_123 = arith.constant 2 : i32
    %166 = vector.broadcast %c2_i32_123 : i32 to vector<4x1xi32>
    %167 = arith.cmpi slt, %165, %166 : vector<4x1xi32>
    %cst_124 = arith.constant 1.000000e+00 : f32
    %cst_125 = arith.constant -1.000000e+00 : f32
    %168 = vector.broadcast %cst_124 : f32 to vector<4x1xf32>
    %169 = vector.broadcast %cst_125 : f32 to vector<4x1xf32>
    %170 = arith.select %167, %168, %169 : vector<4x1xi1>, vector<4x1xf32>
    %171 = vector.broadcast %170 : vector<4x1xf32> to vector<4x256xf32>
    %172 = arith.mulf %171, %164 : vector<4x256xf32>
    %173 = arith.subf %162, %172 : vector<4x256xf32>
    %cst_126 = arith.constant 3.906250e-03 : f32
    %174 = vector.broadcast %cst_126 : f32 to vector<4x256xf32>
    %175 = arith.mulf %173, %174 : vector<4x256xf32>
    %c0_127 = arith.constant 0 : index
    %c0_128 = arith.constant 0 : index
    %176 = vector.load %arg7[%c0_127, %c0_128] : memref<4x72xf32, #tpu.memory_space<vmem>>, vector<4x72xf32>
    %c0_129 = arith.constant 0 : index
    %c0_130 = arith.constant 0 : index
    %177 = vector.load %arg4[%c0_129, %c0_130] : memref<72x256xf32, #tpu.memory_space<vmem>>, vector<72x256xf32>
    %c17_i32_131 = arith.constant 17 : i32
    %178 = tpu.dynamic_rotate %125 by %c17_i32_131 dim 1 : vector<8x256xf32>, i32 -> vector<8x256xf32>
    %c0_132 = arith.constant 0 : index
    %c0_133 = arith.constant 0 : index
    %179 = vector.load %arg10[%c0_132, %c0_133] : memref<72x256xf32, #tpu.memory_space<vmem>>, vector<8x256xf32>
    tpu.vector_store %arg10[%c0_132, %c0_133], %178 {strides = array<i32>} : memref<72x256xf32, #tpu.memory_space<vmem>>, vector<8x256xf32>,
    %c16_i32_134 = arith.constant 16 : i32
    %180 = tpu.dynamic_rotate %125 by %c16_i32_134 dim 1 : vector<8x256xf32>, i32 -> vector<8x256xf32>
    %c8_135 = arith.constant 8 : index
    %c0_136 = arith.constant 0 : index
    %181 = vector.load %arg10[%c8_135, %c0_136] : memref<72x256xf32, #tpu.memory_space<vmem>>, vector<8x256xf32>
    tpu.vector_store %arg10[%c8_135, %c0_136], %180 {strides = array<i32>} : memref<72x256xf32, #tpu.memory_space<vmem>>, vector<8x256xf32>,
    %c15_i32_137 = arith.constant 15 : i32
    %182 = tpu.dynamic_rotate %125 by %c15_i32_137 dim 1 : vector<8x256xf32>, i32 -> vector<8x256xf32>
    %c16_138 = arith.constant 16 : index
    %c0_139 = arith.constant 0 : index
    %183 = vector.load %arg10[%c16_138, %c0_139] : memref<72x256xf32, #tpu.memory_space<vmem>>, vector<8x256xf32>
    tpu.vector_store %arg10[%c16_138, %c0_139], %182 {strides = array<i32>} : memref<72x256xf32, #tpu.memory_space<vmem>>, vector<8x256xf32>,
    %c1_i32_140 = arith.constant 1 : i32
    %184 = tpu.dynamic_rotate %125 by %c1_i32_140 dim 1 : vector<8x256xf32>, i32 -> vector<8x256xf32>
    %c24_141 = arith.constant 24 : index
    %c0_142 = arith.constant 0 : index
    %185 = vector.load %arg10[%c24_141, %c0_142] : memref<72x256xf32, #tpu.memory_space<vmem>>, vector<8x256xf32>
    tpu.vector_store %arg10[%c24_141, %c0_142], %184 {strides = array<i32>} : memref<72x256xf32, #tpu.memory_space<vmem>>, vector<8x256xf32>,
    %c32_143 = arith.constant 32 : index
    %c0_144 = arith.constant 0 : index
    %186 = vector.load %arg10[%c32_143, %c0_144] : memref<72x256xf32, #tpu.memory_space<vmem>>, vector<8x256xf32>
    tpu.vector_store %arg10[%c32_143, %c0_144], %125 {strides = array<i32>} : memref<72x256xf32, #tpu.memory_space<vmem>>, vector<8x256xf32>,
    %c255_i32_145 = arith.constant 255 : i32
    %187 = tpu.dynamic_rotate %125 by %c255_i32_145 dim 1 : vector<8x256xf32>, i32 -> vector<8x256xf32>
    %c40_146 = arith.constant 40 : index
    %c0_147 = arith.constant 0 : index
    %188 = vector.load %arg10[%c40_146, %c0_147] : memref<72x256xf32, #tpu.memory_space<vmem>>, vector<8x256xf32>
    tpu.vector_store %arg10[%c40_146, %c0_147], %187 {strides = array<i32>} : memref<72x256xf32, #tpu.memory_space<vmem>>, vector<8x256xf32>,
    %c241_i32_148 = arith.constant 241 : i32
    %189 = tpu.dynamic_rotate %125 by %c241_i32_148 dim 1 : vector<8x256xf32>, i32 -> vector<8x256xf32>
    %c48_149 = arith.constant 48 : index
    %c0_150 = arith.constant 0 : index
    %190 = vector.load %arg10[%c48_149, %c0_150] : memref<72x256xf32, #tpu.memory_space<vmem>>, vector<8x256xf32>
    tpu.vector_store %arg10[%c48_149, %c0_150], %189 {strides = array<i32>} : memref<72x256xf32, #tpu.memory_space<vmem>>, vector<8x256xf32>,
    %c240_i32_151 = arith.constant 240 : i32
    %191 = tpu.dynamic_rotate %125 by %c240_i32_151 dim 1 : vector<8x256xf32>, i32 -> vector<8x256xf32>
    %c56_152 = arith.constant 56 : index
    %c0_153 = arith.constant 0 : index
    %192 = vector.load %arg10[%c56_152, %c0_153] : memref<72x256xf32, #tpu.memory_space<vmem>>, vector<8x256xf32>
    tpu.vector_store %arg10[%c56_152, %c0_153], %191 {strides = array<i32>} : memref<72x256xf32, #tpu.memory_space<vmem>>, vector<8x256xf32>,
    %c239_i32_154 = arith.constant 239 : i32
    %193 = tpu.dynamic_rotate %125 by %c239_i32_154 dim 1 : vector<8x256xf32>, i32 -> vector<8x256xf32>
    %c64_155 = arith.constant 64 : index
    %c0_156 = arith.constant 0 : index
    %194 = vector.load %arg10[%c64_155, %c0_156] : memref<72x256xf32, #tpu.memory_space<vmem>>, vector<8x256xf32>
    tpu.vector_store %arg10[%c64_155, %c0_156], %193 {strides = array<i32>} : memref<72x256xf32, #tpu.memory_space<vmem>>, vector<8x256xf32>,
    %c0_157 = arith.constant 0 : index
    %c0_158 = arith.constant 0 : index
    %195 = vector.load %arg10[%c0_157, %c0_158] : memref<72x256xf32, #tpu.memory_space<vmem>>, vector<72x256xf32>
    %196 = arith.mulf %195, %177 : vector<72x256xf32>
    %cst_159 = arith.constant dense<0.000000e+00> : vector<4x256xf32>
    %197 = tpu.matmul %176, %196, %cst_159 {dimension_numbers = #tpu.dot_dimension_numbers<[1], [0], [0], [1], [0, 0, 1, 1], [], []>} : vector<4x72xf32>, vector<72x256xf32>, vector<4x256xf32> -> vector<4x256xf32>
    %cst_160 = arith.constant dense<0.000000e+00> : vector<4xf32>
    %198 = vector.multi_reduction <add>, %197, %cst_160 [1] : vector<4x256xf32> to vector<4xf32>
    %199 = vector.shape_cast %198 : vector<4xf32> to vector<4x1xf32>
    %cst_161 = arith.constant 2.560000e+02 : f32
    %200 = vector.broadcast %cst_161 : f32 to vector<4x1xf32>
    %201 = arith.divf %199, %200 : vector<4x1xf32>
    %202 = vector.broadcast %201 : vector<4x1xf32> to vector<4x256xf32>
    %203 = arith.subf %197, %202 : vector<4x256xf32>
    %204 = arith.mulf %203, %203 : vector<4x256xf32>
    %cst_162 = arith.constant dense<0.000000e+00> : vector<4xf32>
    %205 = vector.multi_reduction <add>, %204, %cst_162 [1] : vector<4x256xf32> to vector<4xf32>
    %206 = vector.shape_cast %205 : vector<4xf32> to vector<4x1xf32>
    %cst_163 = arith.constant 2.560000e+02 : f32
    %207 = vector.broadcast %cst_163 : f32 to vector<4x1xf32>
    %208 = arith.divf %206, %207 : vector<4x1xf32>
    %cst_164 = arith.constant 9.99999974E-6 : f32
    %209 = vector.broadcast %cst_164 : f32 to vector<4x1xf32>
    %210 = arith.addf %208, %209 : vector<4x1xf32>
    %211 = math.rsqrt %210 : vector<4x1xf32>
    %212 = vector.broadcast %211 : vector<4x1xf32> to vector<4x256xf32>
    %213 = arith.mulf %203, %212 : vector<4x256xf32>
    %cst_165 = arith.constant 0.000000e+00 : f32
    %214 = vector.broadcast %cst_165 : f32 to vector<4x256xf32>
    %215 = arith.cmpf oge, %213, %214 : vector<4x256xf32>
    %cst_166 = arith.constant 2.000000e-01 : f32
    %216 = vector.broadcast %cst_166 : f32 to vector<4x256xf32>
    %217 = arith.mulf %216, %213 : vector<4x256xf32>
    %218 = arith.select %215, %213, %217 : vector<4x256xi1>, vector<4x256xf32>
    %c0_167 = arith.constant 0 : index
    %c0_168 = arith.constant 0 : index
    %c0_169 = arith.constant 0 : index
    %c0_170 = arith.constant 0 : index
    %219 = vector.load %arg9[%c0_167, %c0_168, %c0_169, %c0_170] : memref<1x2x4x256xf32, #tpu.memory_space<vmem>>, vector<1x1x4x256xf32>
    %220 = vector.shape_cast %219 : vector<1x1x4x256xf32> to vector<4x256xf32>
    %221 = vector.shape_cast %218 : vector<4x256xf32> to vector<1x1x4x256xf32>
    tpu.vector_store %arg9[%c0_167, %c0_168, %c0_169, %c0_170], %221 {strides = array<i32>} : memref<1x2x4x256xf32, #tpu.memory_space<vmem>>, vector<1x1x4x256xf32>,
    %cst_171 = arith.constant dense<0.000000e+00> : vector<4xf32>
    %222 = vector.multi_reduction <add>, %175, %cst_171 [1] : vector<4x256xf32> to vector<4xf32>
    %223 = vector.shape_cast %222 : vector<4xf32> to vector<4x1xf32>
    %cst_172 = arith.constant 2.560000e+02 : f32
    %224 = vector.broadcast %cst_172 : f32 to vector<4x1xf32>
    %225 = arith.divf %223, %224 : vector<4x1xf32>
    %226 = vector.broadcast %225 : vector<4x1xf32> to vector<4x256xf32>
    %227 = arith.subf %175, %226 : vector<4x256xf32>
    %228 = arith.mulf %227, %227 : vector<4x256xf32>
    %cst_173 = arith.constant dense<0.000000e+00> : vector<4xf32>
    %229 = vector.multi_reduction <add>, %228, %cst_173 [1] : vector<4x256xf32> to vector<4xf32>
    %230 = vector.shape_cast %229 : vector<4xf32> to vector<4x1xf32>
    %cst_174 = arith.constant 2.560000e+02 : f32
    %231 = vector.broadcast %cst_174 : f32 to vector<4x1xf32>
    %232 = arith.divf %230, %231 : vector<4x1xf32>
    %cst_175 = arith.constant 9.99999974E-6 : f32
    %233 = vector.broadcast %cst_175 : f32 to vector<4x1xf32>
    %234 = arith.addf %232, %233 : vector<4x1xf32>
    %235 = math.rsqrt %234 : vector<4x1xf32>
    %236 = vector.broadcast %235 : vector<4x1xf32> to vector<4x256xf32>
    %237 = arith.mulf %227, %236 : vector<4x256xf32>
    %cst_176 = arith.constant 0.000000e+00 : f32
    %238 = vector.broadcast %cst_176 : f32 to vector<4x256xf32>
    %239 = arith.cmpf oge, %237, %238 : vector<4x256xf32>
    %cst_177 = arith.constant 2.000000e-01 : f32
    %240 = vector.broadcast %cst_177 : f32 to vector<4x256xf32>
    %241 = arith.mulf %240, %237 : vector<4x256xf32>
    %242 = arith.select %239, %237, %241 : vector<4x256xi1>, vector<4x256xf32>
    %c0_178 = arith.constant 0 : index
    %c1 = arith.constant 1 : index
    %c0_179 = arith.constant 0 : index
    %c0_180 = arith.constant 0 : index
    %243 = vector.load %arg9[%c0_178, %c1, %c0_179, %c0_180] : memref<1x2x4x256xf32, #tpu.memory_space<vmem>>, vector<1x1x4x256xf32>
    %244 = vector.shape_cast %243 : vector<1x1x4x256xf32> to vector<4x256xf32>
    %245 = vector.shape_cast %242 : vector<4x256xf32> to vector<1x1x4x256xf32>
    tpu.vector_store %arg9[%c0_178, %c1, %c0_179, %c0_180], %245 {strides = array<i32>} : memref<1x2x4x256xf32, #tpu.memory_space<vmem>>, vector<1x1x4x256xf32>,
    return
  }
  func.func @transform_0(%arg0: i32) -> (i32, i32, i32) {
    %c0_i32 = arith.constant 0 : i32
    %c0_i32_0 = arith.constant 0 : i32
    %c0_i32_1 = arith.constant 0 : i32
    return %arg0, %c0_i32, %c0_i32_0 : i32, i32, i32
  }
  func.func @transform_1(%arg0: i32) -> (i32, i32) {
    %c0_i32 = arith.constant 0 : i32
    %c0_i32_0 = arith.constant 0 : i32
    %c0_i32_1 = arith.constant 0 : i32
    return %c0_i32, %c0_i32_0 : i32, i32
  }
  func.func @transform_2(%arg0: i32) -> (i32, i32) {
    %c0_i32 = arith.constant 0 : i32
    %c0_i32_0 = arith.constant 0 : i32
    %c0_i32_1 = arith.constant 0 : i32
    return %c0_i32, %c0_i32_0 : i32, i32
  }
  func.func @transform_3(%arg0: i32) -> (i32, i32) {
    %c0_i32 = arith.constant 0 : i32
    %c0_i32_0 = arith.constant 0 : i32
    %c0_i32_1 = arith.constant 0 : i32
    return %c0_i32, %c0_i32_0 : i32, i32
  }
  func.func @transform_4(%arg0: i32) -> (i32, i32) {
    %c0_i32 = arith.constant 0 : i32
    %c0_i32_0 = arith.constant 0 : i32
    %c0_i32_1 = arith.constant 0 : i32
    return %c0_i32, %c0_i32_0 : i32, i32
  }
  func.func @transform_5(%arg0: i32) -> (i32, i32) {
    %c0_i32 = arith.constant 0 : i32
    %c0_i32_0 = arith.constant 0 : i32
    %c0_i32_1 = arith.constant 0 : i32
    return %c0_i32, %c0_i32_0 : i32, i32
  }
  func.func @transform_6(%arg0: i32) -> (i32, i32) {
    %c0_i32 = arith.constant 0 : i32
    %c0_i32_0 = arith.constant 0 : i32
    %c0_i32_1 = arith.constant 0 : i32
    return %c0_i32, %c0_i32_0 : i32, i32
  }
  func.func @transform_7(%arg0: i32) -> (i32, i32) {
    %c0_i32 = arith.constant 0 : i32
    %c0_i32_0 = arith.constant 0 : i32
    %c0_i32_1 = arith.constant 0 : i32
    return %c0_i32, %c0_i32_0 : i32, i32
  }
  func.func @transform_8(%arg0: i32) -> (i32, i32, i32, i32) {
    %c0_i32 = arith.constant 0 : i32
    %c0_i32_0 = arith.constant 0 : i32
    %c0_i32_1 = arith.constant 0 : i32
    %c0_i32_2 = arith.constant 0 : i32
    return %arg0, %c0_i32, %c0_i32_0, %c0_i32_1 : i32, i32, i32, i32
  }
}

</mosaic_0001>

<llo_original>
// kernel: multidomain_conv_block.1
$region0: #{multidomain_conv_block.1}
  #allocation0 [shape = 'u32[]', space=smem, size = 0x4, offset = 0x4, fixed_abs, tag = 'smem constant byte address 0x4 - core index']
  #allocation1 [shape = 'u32[144,128]{1,0:T(1,128)}', space=vmem, size = 0x12000, scoped, tag = 'internal scratch']
  #allocation2 [shape = 'f32[72,256]{1,0:T(8,128)}', space=vmem, size = 0x12000, scoped, tag = 'scratch operand']
  #allocation3 [shape = 'f32[8,256]{1,0:T(8,128)}', space=vmem, size = 0x2000, scoped, tag = 'scratch operand']
  %s0 = inlined_call_operand.vmem [shape: f32[1,8,256], index: 0, kind: input, shape index: {}]
  %s1 = inlined_call_operand.vmem [shape: f32[256,512], index: 1, kind: input, shape index: {}]
  %s2 = inlined_call_operand.vmem [shape: f32[72,256], index: 2, kind: input, shape index: {}, may-alias: {2,3}]
  %s3 = inlined_call_operand.vmem [shape: f32[72,256], index: 3, kind: input, shape index: {}, may-alias: {2,3}]
  %s4 = inlined_call_operand.vmem [shape: f32[4,72], index: 4, kind: input, shape index: {}]
  %s5 = inlined_call_operand.vmem [shape: f32[4,72], index: 5, kind: input, shape index: {}]
  %s6 = inlined_call_operand.vmem [shape: f32[4,72], index: 6, kind: input, shape index: {}]
  %s7 = inlined_call_operand.vmem [shape: f32[4,72], index: 7, kind: input, shape index: {}]
  %s8 = inlined_call_operand.vmem [shape: f32[1,2,4,256], index: 8, kind: output, shape index: {}]
  %s9 = sld [smem:[#allocation0]]
  $region42: #{multidomain_conv_block.1} parent=0
    _
  %s11 = ssub.s32 1, %s9
  %s12 = scalar_select 0, %s11, %s9
  // Predicated region
  $region2: #{multidomain_conv_block.1} parent=0 // pred_check
    _
  $region3: #{multidomain_conv_block.1} parent=0 // pred_check_branch
    %14 = sbr.rel (0) target = $region5
  $region4: #{multidomain_conv_block.1} parent=0 // pred_region
    _
  $region5: #{multidomain_conv_block.1} parent=0 // pred_fallthru
    _
  // Predicated region
  $region6: #{multidomain_conv_block.1} parent=0 // pred_check
    _
  $region7: #{multidomain_conv_block.1} parent=0 // pred_check_branch
    %16 = sbr.rel (0) target = $region9
  $region8: #{multidomain_conv_block.1} parent=0 // pred_region
    _
  $region9: #{multidomain_conv_block.1} parent=0 // pred_fallthru
    _
  // Predicated region
  $region10: #{multidomain_conv_block.1} parent=0 // pred_check
    _
  $region11: #{multidomain_conv_block.1} parent=0 // pred_check_branch
    %18 = sbr.rel (0) target = $region13
  $region12: #{multidomain_conv_block.1} parent=0 // pred_region
    _
  $region13: #{multidomain_conv_block.1} parent=0 // pred_fallthru
    _
  // Predicated region
  $region14: #{multidomain_conv_block.1} parent=0 // pred_check
    _
  $region15: #{multidomain_conv_block.1} parent=0 // pred_check_branch
    %20 = sbr.rel (0) target = $region17
  $region16: #{multidomain_conv_block.1} parent=0 // pred_region
    _
  $region17: #{multidomain_conv_block.1} parent=0 // pred_fallthru
    _
  // Predicated region
  $region18: #{multidomain_conv_block.1} parent=0 // pred_check
    _
  $region19: #{multidomain_conv_block.1} parent=0 // pred_check_branch
    %22 = sbr.rel (0) target = $region21
  $region20: #{multidomain_conv_block.1} parent=0 // pred_region
    _
  $region21: #{multidomain_conv_block.1} parent=0 // pred_fallthru
    _
  // Predicated region
  $region22: #{multidomain_conv_block.1} parent=0 // pred_check
    _
  $region23: #{multidomain_conv_block.1} parent=0 // pred_check_branch
    %24 = sbr.rel (0) target = $region25
  $region24: #{multidomain_conv_block.1} parent=0 // pred_region
    _
  $region25: #{multidomain_conv_block.1} parent=0 // pred_fallthru
    _
  // Predicated region
  $region26: #{multidomain_conv_block.1} parent=0 // pred_check
    _
  $region27: #{multidomain_conv_block.1} parent=0 // pred_check_branch
    %26 = sbr.rel (0) target = $region29
  $region28: #{multidomain_conv_block.1} parent=0 // pred_region
    _
  $region29: #{multidomain_conv_block.1} parent=0 // pred_fallthru
    _
  // Predicated region
  $region30: #{multidomain_conv_block.1} parent=0 // pred_check
    _
  $region31: #{multidomain_conv_block.1} parent=0 // pred_check_branch
    %28 = sbr.rel (0) target = $region33
  $region32: #{multidomain_conv_block.1} parent=0 // pred_region
    _
  $region33: #{multidomain_conv_block.1} parent=0 // pred_fallthru
    _
  %v29 = vld [vmem:[%s1] sm:$0xff]
  %v30 = vld [vmem:[%s1 + $0x8] sm:$0xff]
  %v31 = vld [vmem:[%s1 + $0x10] sm:$0xff]
  %v32 = vld [vmem:[%s1 + $0x18] sm:$0xff]
  %v33 = vld [vmem:[%s1 + $0x20] sm:$0xff]
  %v34 = vld [vmem:[%s1 + $0x28] sm:$0xff]
  %v35 = vld [vmem:[%s1 + $0x30] sm:$0xff]
  %v36 = vld [vmem:[%s1 + $0x38] sm:$0xff]
  %v37 = vld [vmem:[%s1 + $0x40] sm:$0xff]
  %v38 = vld [vmem:[%s1 + $0x48] sm:$0xff]
  %v39 = vld [vmem:[%s1 + $0x50] sm:$0xff]
  %v40 = vld [vmem:[%s1 + $0x58] sm:$0xff]
  %v41 = vld [vmem:[%s1 + $0x60] sm:$0xff]
  %v42 = vld [vmem:[%s1 + $0x68] sm:$0xff]
  %v43 = vld [vmem:[%s1 + $0x70] sm:$0xff]
  %v44 = vld [vmem:[%s1 + $0x78] sm:$0xff]
  %v45 = vld [vmem:[%s1 + $0x80] sm:$0xff]
  %v46 = vld [vmem:[%s1 + $0x88] sm:$0xff]
  %v47 = vld [vmem:[%s1 + $0x90] sm:$0xff]
  %v48 = vld [vmem:[%s1 + $0x98] sm:$0xff]
  %v49 = vld [vmem:[%s1 + $0xa0] sm:$0xff]
  %v50 = vld [vmem:[%s1 + $0xa8] sm:$0xff]
  %v51 = vld [vmem:[%s1 + $0xb0] sm:$0xff]
  %v52 = vld [vmem:[%s1 + $0xb8] sm:$0xff]
  %v53 = vld [vmem:[%s1 + $0xc0] sm:$0xff]
  %v54 = vld [vmem:[%s1 + $0xc8] sm:$0xff]
  %v55 = vld [vmem:[%s1 + $0xd0] sm:$0xff]
  %v56 = vld [vmem:[%s1 + $0xd8] sm:$0xff]
  %v57 = vld [vmem:[%s1 + $0xe0] sm:$0xff]
  %v58 = vld [vmem:[%s1 + $0xe8] sm:$0xff]
  %v59 = vld [vmem:[%s1 + $0xf0] sm:$0xff]
  %v60 = vld [vmem:[%s1 + $0xf8] sm:$0xff]
  %v61 = vld [vmem:[%s1 + $0x100] sm:$0xff]
  %v62 = vld [vmem:[%s1 + $0x108] sm:$0xff]
  %v63 = vld [vmem:[%s1 + $0x110] sm:$0xff]
  %v64 = vld [vmem:[%s1 + $0x118] sm:$0xff]
  %v65 = vld [vmem:[%s1 + $0x120] sm:$0xff]
  %v66 = vld [vmem:[%s1 + $0x128] sm:$0xff]
  %v67 = vld [vmem:[%s1 + $0x130] sm:$0xff]
  %v68 = vld [vmem:[%s1 + $0x138] sm:$0xff]
  %v69 = vld [vmem:[%s1 + $0x140] sm:$0xff]
  %v70 = vld [vmem:[%s1 + $0x148] sm:$0xff]
  %v71 = vld [vmem:[%s1 + $0x150] sm:$0xff]
  %v72 = vld [vmem:[%s1 + $0x158] sm:$0xff]
  %v73 = vld [vmem:[%s1 + $0x160] sm:$0xff]
  %v74 = vld [vmem:[%s1 + $0x168] sm:$0xff]
  %v75 = vld [vmem:[%s1 + $0x170] sm:$0xff]
  %v76 = vld [vmem:[%s1 + $0x178] sm:$0xff]
  %v77 = vld [vmem:[%s1 + $0x180] sm:$0xff]
  %v78 = vld [vmem:[%s1 + $0x188] sm:$0xff]
  %v79 = vld [vmem:[%s1 + $0x190] sm:$0xff]
  %v80 = vld [vmem:[%s1 + $0x198] sm:$0xff]
  %v81 = vld [vmem:[%s1 + $0x1a0] sm:$0xff]
  %v82 = vld [vmem:[%s1 + $0x1a8] sm:$0xff]
  %v83 = vld [vmem:[%s1 + $0x1b0] sm:$0xff]
  %v84 = vld [vmem:[%s1 + $0x1b8] sm:$0xff]
  %v85 = vld [vmem:[%s1 + $0x1c0] sm:$0xff]
  %v86 = vld [vmem:[%s1 + $0x1c8] sm:$0xff]
  %v87 = vld [vmem:[%s1 + $0x1d0] sm:$0xff]
  %v88 = vld [vmem:[%s1 + $0x1d8] sm:$0xff]
  %v89 = vld [vmem:[%s1 + $0x1e0] sm:$0xff]
  %v90 = vld [vmem:[%s1 + $0x1e8] sm:$0xff]
  %v91 = vld [vmem:[%s1 + $0x1f0] sm:$0xff]
  %v92 = vld [vmem:[%s1 + $0x1f8] sm:$0xff]
  %v93 = vld [vmem:[%s1 + $0x200] sm:$0xff]
  %v94 = vld [vmem:[%s1 + $0x208] sm:$0xff]
  %v95 = vld [vmem:[%s1 + $0x210] sm:$0xff]
  %v96 = vld [vmem:[%s1 + $0x218] sm:$0xff]
  %v97 = vld [vmem:[%s1 + $0x220] sm:$0xff]
  %v98 = vld [vmem:[%s1 + $0x228] sm:$0xff]
  %v99 = vld [vmem:[%s1 + $0x230] sm:$0xff]
  %v100 = vld [vmem:[%s1 + $0x238] sm:$0xff]
  %v101 = vld [vmem:[%s1 + $0x240] sm:$0xff]
  %v102 = vld [vmem:[%s1 + $0x248] sm:$0xff]
  %v103 = vld [vmem:[%s1 + $0x250] sm:$0xff]
  %v104 = vld [vmem:[%s1 + $0x258] sm:$0xff]
  %v105 = vld [vmem:[%s1 + $0x260] sm:$0xff]
  %v106 = vld [vmem:[%s1 + $0x268] sm:$0xff]
  %v107 = vld [vmem:[%s1 + $0x270] sm:$0xff]
  %v108 = vld [vmem:[%s1 + $0x278] sm:$0xff]
  %v109 = vld [vmem:[%s1 + $0x280] sm:$0xff]
  %v110 = vld [vmem:[%s1 + $0x288] sm:$0xff]
  %v111 = vld [vmem:[%s1 + $0x290] sm:$0xff]
  %v112 = vld [vmem:[%s1 + $0x298] sm:$0xff]
  %v113 = vld [vmem:[%s1 + $0x2a0] sm:$0xff]
  %v114 = vld [vmem:[%s1 + $0x2a8] sm:$0xff]
  %v115 = vld [vmem:[%s1 + $0x2b0] sm:$0xff]
  %v116 = vld [vmem:[%s1 + $0x2b8] sm:$0xff]
  %v117 = vld [vmem:[%s1 + $0x2c0] sm:$0xff]
  %v118 = vld [vmem:[%s1 + $0x2c8] sm:$0xff]
  %v119 = vld [vmem:[%s1 + $0x2d0] sm:$0xff]
  %v120 = vld [vmem:[%s1 + $0x2d8] sm:$0xff]
  %v121 = vld [vmem:[%s1 + $0x2e0] sm:$0xff]
  %v122 = vld [vmem:[%s1 + $0x2e8] sm:$0xff]
  %v123 = vld [vmem:[%s1 + $0x2f0] sm:$0xff]
  %v124 = vld [vmem:[%s1 + $0x2f8] sm:$0xff]
  %v125 = vld [vmem:[%s1 + $0x300] sm:$0xff]
  %v126 = vld [vmem:[%s1 + $0x308] sm:$0xff]
  %v127 = vld [vmem:[%s1 + $0x310] sm:$0xff]
  %v128 = vld [vmem:[%s1 + $0x318] sm:$0xff]
  %v129 = vld [vmem:[%s1 + $0x320] sm:$0xff]
  %v130 = vld [vmem:[%s1 + $0x328] sm:$0xff]
  %v131 = vld [vmem:[%s1 + $0x330] sm:$0xff]
  %v132 = vld [vmem:[%s1 + $0x338] sm:$0xff]
  %v133 = vld [vmem:[%s1 + $0x340] sm:$0xff]
  %v134 = vld [vmem:[%s1 + $0x348] sm:$0xff]
  %v135 = vld [vmem:[%s1 + $0x350] sm:$0xff]
  %v136 = vld [vmem:[%s1 + $0x358] sm:$0xff]
  %v137 = vld [vmem:[%s1 + $0x360] sm:$0xff]
  %v138 = vld [vmem:[%s1 + $0x368] sm:$0xff]
  %v139 = vld [vmem:[%s1 + $0x370] sm:$0xff]
  %v140 = vld [vmem:[%s1 + $0x378] sm:$0xff]
  %v141 = vld [vmem:[%s1 + $0x380] sm:$0xff]
  %v142 = vld [vmem:[%s1 + $0x388] sm:$0xff]
  %v143 = vld [vmem:[%s1 + $0x390] sm:$0xff]
  %v144 = vld [vmem:[%s1 + $0x398] sm:$0xff]
  %v145 = vld [vmem:[%s1 + $0x3a0] sm:$0xff]
  %v146 = vld [vmem:[%s1 + $0x3a8] sm:$0xff]
  %v147 = vld [vmem:[%s1 + $0x3b0] sm:$0xff]
  %v148 = vld [vmem:[%s1 + $0x3b8] sm:$0xff]
  %v149 = vld [vmem:[%s1 + $0x3c0] sm:$0xff]
  %v150 = vld [vmem:[%s1 + $0x3c8] sm:$0xff]
  %v151 = vld [vmem:[%s1 + $0x3d0] sm:$0xff]
  %v152 = vld [vmem:[%s1 + $0x3d8] sm:$0xff]
  %v153 = vld [vmem:[%s1 + $0x3e0] sm:$0xff]
  %v154 = vld [vmem:[%s1 + $0x3e8] sm:$0xff]
  %v155 = vld [vmem:[%s1 + $0x3f0] sm:$0xff]
  %v156 = vld [vmem:[%s1 + $0x3f8] sm:$0xff]
  %v157 = vld [vmem:[%s0] sm:$0xff]
  %v158 = vld [vmem:[%s0 + $0x8] sm:$0xff]
  %159 = vmatprep.subr.mxu0 %v30
  %160 = vmatpush1.msra.mxu0 %v29
  %161 = vmatprep.subr.mxu0 %v34
  %162 = vmatpush1.msra.mxu0 %v33
  %163 = vmatprep.subr.mxu0 %v38
  %164 = vmatpush1.msra.mxu0 %v37
  %165 = vmatprep.subr.mxu0 %v42
  %166 = vmatpush1.msra.mxu0 %v41
  %167 = vmatprep.subr.mxu0 %v46
  %168 = vmatpush1.msra.mxu0 %v45
  %169 = vmatprep.subr.mxu0 %v50
  %170 = vmatpush1.msra.mxu0 %v49
  %171 = vmatprep.subr.mxu0 %v54
  %172 = vmatpush1.msra.mxu0 %v53
  %173 = vmatprep.subr.mxu0 %v58
  %174 = vmatpush1.msra.mxu0 %v57
  %175 = vmatprep.subr.mxu0 %v62
  %176 = vmatpush1.msra.mxu0 %v61
  %177 = vmatprep.subr.mxu0 %v66
  %178 = vmatpush1.msra.mxu0 %v65
  %179 = vmatprep.subr.mxu0 %v70
  %180 = vmatpush1.msra.mxu0 %v69
  %181 = vmatprep.subr.mxu0 %v74
  %182 = vmatpush1.msra.mxu0 %v73
  %183 = vmatprep.subr.mxu0 %v78
  %184 = vmatpush1.msra.mxu0 %v77
  %185 = vmatprep.subr.mxu0 %v82
  %186 = vmatpush1.msra.mxu0 %v81
  %187 = vmatprep.subr.mxu0 %v86
  %188 = vmatpush1.msra.mxu0 %v85
  %189 = vmatprep.subr.mxu0 %v90
  %190 = vmatpush1.msra.mxu0 %v89
  %191 = vmatprep.subr.mxu0 %v94
  %192 = vmatpush1.msra.mxu0 %v93
  %193 = vmatprep.subr.mxu0 %v98
  %194 = vmatpush1.msra.mxu0 %v97
  %195 = vmatprep.subr.mxu0 %v102
  %196 = vmatpush1.msra.mxu0 %v101
  %197 = vmatprep.subr.mxu0 %v106
  %198 = vmatpush1.msra.mxu0 %v105
  %199 = vmatprep.subr.mxu0 %v110
  %200 = vmatpush1.msra.mxu0 %v109
  %201 = vmatprep.subr.mxu0 %v114
  %202 = vmatpush1.msra.mxu0 %v113
  %203 = vmatprep.subr.mxu0 %v118
  %204 = vmatpush1.msra.mxu0 %v117
  %205 = vmatprep.subr.mxu0 %v122
  %206 = vmatpush1.msra.mxu0 %v121
  %207 = vmatprep.subr.mxu0 %v126
  %208 = vmatpush1.msra.mxu0 %v125
  %209 = vmatprep.subr.mxu0 %v130
  %210 = vmatpush1.msra.mxu0 %v129
  %211 = vmatprep.subr.mxu0 %v134
  %212 = vmatpush1.msra.mxu0 %v133
  %213 = vmatprep.subr.mxu0 %v138
  %214 = vmatpush1.msra.mxu0 %v137
  %215 = vmatprep.subr.mxu0 %v142
  %216 = vmatpush1.msra.mxu0 %v141
  %217 = vmatprep.subr.mxu0 %v146
  %218 = vmatpush1.msra.mxu0 %v145
  %219 = vmatprep.subr.mxu0 %v150
  %220 = vmatpush1.msra.mxu0 %v149
  %221 = vmatprep.subr.mxu0 %v154
  %222 = vmatpush1.msra.mxu0 %v153
  %223 = vmatprep.mubr.f32.mxu0 %v158
  %224 = vmatmul.mubr.f32.gmra.mrb[0].mxu0 %v157
  %v225 = vpop.f32.mrb[0].mxu0
  %v226 = vadd.f32 0.0, %v225
  %v227 = vpop.f32.mrb[0].mxu0
  %v228 = vadd.f32 0.0, %v227
  %229 = vdwg.mxu0
  %230 = vmatprep.subr.mxu0 %v32
  %231 = vmatpush1.msra.mxu0 %v31
  %232 = vmatprep.subr.mxu0 %v36
  %233 = vmatpush1.msra.mxu0 %v35
  %234 = vmatprep.subr.mxu0 %v40
  %235 = vmatpush1.msra.mxu0 %v39
  %236 = vmatprep.subr.mxu0 %v44
  %237 = vmatpush1.msra.mxu0 %v43
  %238 = vmatprep.subr.mxu0 %v48
  %239 = vmatpush1.msra.mxu0 %v47
  %240 = vmatprep.subr.mxu0 %v52
  %241 = vmatpush1.msra.mxu0 %v51
  %242 = vmatprep.subr.mxu0 %v56
  %243 = vmatpush1.msra.mxu0 %v55
  %244 = vmatprep.subr.mxu0 %v60
  %245 = vmatpush1.msra.mxu0 %v59
  %246 = vmatprep.subr.mxu0 %v64
  %247 = vmatpush1.msra.mxu0 %v63
  %248 = vmatprep.subr.mxu0 %v68
  %249 = vmatpush1.msra.mxu0 %v67
  %250 = vmatprep.subr.mxu0 %v72
  %251 = vmatpush1.msra.mxu0 %v71
  %252 = vmatprep.subr.mxu0 %v76
  %253 = vmatpush1.msra.mxu0 %v75
  %254 = vmatprep.subr.mxu0 %v80
  %255 = vmatpush1.msra.mxu0 %v79
  %256 = vmatprep.subr.mxu0 %v84
  %257 = vmatpush1.msra.mxu0 %v83
  %258 = vmatprep.subr.mxu0 %v88
  %259 = vmatpush1.msra.mxu0 %v87
  %260 = vmatprep.subr.mxu0 %v92
  %261 = vmatpush1.msra.mxu0 %v91
  %262 = vmatprep.subr.mxu0 %v96
  %263 = vmatpush1.msra.mxu0 %v95
  %264 = vmatprep.subr.mxu0 %v100
  %265 = vmatpush1.msra.mxu0 %v99
  %266 = vmatprep.subr.mxu0 %v104
  %267 = vmatpush1.msra.mxu0 %v103
  %268 = vmatprep.subr.mxu0 %v108
  %269 = vmatpush1.msra.mxu0 %v107
  %270 = vmatprep.subr.mxu0 %v112
  %271 = vmatpush1.msra.mxu0 %v111
  %272 = vmatprep.subr.mxu0 %v116
  %273 = vmatpush1.msra.mxu0 %v115
  %274 = vmatprep.subr.mxu0 %v120
  %275 = vmatpush1.msra.mxu0 %v119
  %276 = vmatprep.subr.mxu0 %v124
  %277 = vmatpush1.msra.mxu0 %v123
  %278 = vmatprep.subr.mxu0 %v128
  %279 = vmatpush1.msra.mxu0 %v127
  %280 = vmatprep.subr.mxu0 %v132
  %281 = vmatpush1.msra.mxu0 %v131
  %282 = vmatprep.subr.mxu0 %v136
  %283 = vmatpush1.msra.mxu0 %v135
  %284 = vmatprep.subr.mxu0 %v140
  %285 = vmatpush1.msra.mxu0 %v139
  %286 = vmatprep.subr.mxu0 %v144
  %287 = vmatpush1.msra.mxu0 %v143
  %288 = vmatprep.subr.mxu0 %v148
  %289 = vmatpush1.msra.mxu0 %v147
  %290 = vmatprep.subr.mxu0 %v152
  %291 = vmatpush1.msra.mxu0 %v151
  %292 = vmatprep.subr.mxu0 %v156
  %293 = vmatpush1.msra.mxu0 %v155
  %294 = vmatprep.mubr.f32.mxu0 %v158
  %295 = vmatmul.mubr.f32.gmra.mrb[0].mxu0 %v157
  %v296 = vpop.f32.mrb[0].mxu0
  %v297 = vadd.f32 0.0, %v296
  %v298 = vpop.f32.mrb[0].mxu0
  %v299 = vadd.f32 0.0, %v298
  %300 = vdwg.mxu0
  %v301 = vrot.slane %v297, 4
  %v302 = vrot.slane %v299, 4
  %v303 = vlaneseq
  %v304 = vshrl.u32 %v303, 7
  %vm305 = vcmp.lt.s32.totalorder %v304, 4
  %v306 = vsel %vm305, 1.0, -1.0
  %v307 = vmul.f32 %v306, %v301
  %v308 = vmul.f32 %v306, %v302
  %v309 = vadd.f32 %v226, %v307
  %v310 = vadd.f32 %v228, %v308
  %v311 = vld [vmem:[%s5] sm:$0xf]
  %v312 = vld [vmem:[%s2] sm:$0xff]
  %v313 = vld [vmem:[%s2 + $0x8] sm:$0xff]
  %v314 = vld [vmem:[%s2 + $0x10] sm:$0xff]
  %v315 = vld [vmem:[%s2 + $0x18] sm:$0xff]
  %v316 = vld [vmem:[%s2 + $0x20] sm:$0xff]
  %v317 = vld [vmem:[%s2 + $0x28] sm:$0xff]
  %v318 = vld [vmem:[%s2 + $0x30] sm:$0xff]
  %v319 = vld [vmem:[%s2 + $0x38] sm:$0xff]
  %v320 = vld [vmem:[%s2 + $0x40] sm:$0xff]
  %v321 = vld [vmem:[%s2 + $0x48] sm:$0xff]
  %v322 = vld [vmem:[%s2 + $0x50] sm:$0xff]
  %v323 = vld [vmem:[%s2 + $0x58] sm:$0xff]
  %v324 = vld [vmem:[%s2 + $0x60] sm:$0xff]
  %v325 = vld [vmem:[%s2 + $0x68] sm:$0xff]
  %v326 = vld [vmem:[%s2 + $0x70] sm:$0xff]
  %v327 = vld [vmem:[%s2 + $0x78] sm:$0xff]
  %v328 = vld [vmem:[%s2 + $0x80] sm:$0xff]
  %v329 = vld [vmem:[%s2 + $0x88] sm:$0xff]
  %330 = vrot.lane.b32.xlu0 %v309, 17
  %v331 = vpop.permute.xlu0 %330
  %332 = vrot.lane.b32.xlu0 %v310, 17
  %v333 = vpop.permute.xlu0 %332
  %v334 = vlaneseq
  %v335 = vand.u32 %v334, 127
  %vm336 = vcmp.lt.s32.totalorder %v335, 17
  %v337 = vsel %vm336, %v331, %v333
  %v338 = vsel %vm336, %v333, %v331
  %339 = vst [vmem:[#allocation2] sm:$0xff] %v338
  %340 = vst [vmem:[#allocation2 + $0x8] sm:$0xff] %v337
  %341 = vrot.lane.b32.xlu0 %v309, 16
  %v342 = vpop.permute.xlu0 %341
  %343 = vrot.lane.b32.xlu0 %v310, 16
  %v344 = vpop.permute.xlu0 %343
  %vm345 = vcmp.lt.s32.totalorder %v335, 16
  %v346 = vsel %vm345, %v342, %v344
  %v347 = vsel %vm345, %v344, %v342
  %348 = vst [vmem:[#allocation2 + $0x10] sm:$0xff] %v347
  %349 = vst [vmem:[#allocation2 + $0x18] sm:$0xff] %v346
  %350 = vrot.lane.b32.xlu0 %v309, 15
  %v351 = vpop.permute.xlu0 %350
  %352 = vrot.lane.b32.xlu0 %v310, 15
  %v353 = vpop.permute.xlu0 %352
  %vm354 = vcmp.lt.s32.totalorder %v335, 15
  %v355 = vsel %vm354, %v351, %v353
  %v356 = vsel %vm354, %v353, %v351
  %357 = vst [vmem:[#allocation2 + $0x20] sm:$0xff] %v356
  %358 = vst [vmem:[#allocation2 + $0x28] sm:$0xff] %v355
  %359 = vrot.lane.b32.xlu0 %v309, 1
  %v360 = vpop.permute.xlu0 %359
  %361 = vrot.lane.b32.xlu0 %v310, 1
  %v362 = vpop.permute.xlu0 %361
  %vm363 = vcmp.lt.s32.totalorder %v335, 1
  %v364 = vsel %vm363, %v360, %v362
  %v365 = vsel %vm363, %v362, %v360
  %366 = vst [vmem:[#allocation2 + $0x30] sm:$0xff] %v365
  %367 = vst [vmem:[#allocation2 + $0x38] sm:$0xff] %v364
  %368 = vst [vmem:[#allocation2 + $0x40] sm:$0xff] %v309
  %369 = vst [vmem:[#allocation2 + $0x48] sm:$0xff] %v310
  %370 = vrot.lane.b32.xlu0 %v309, 127
  %v371 = vpop.permute.xlu0 %370
  %372 = vrot.lane.b32.xlu0 %v310, 127
  %v373 = vpop.permute.xlu0 %372
  %vm374 = vcmp.lt.s32.totalorder %v335, 127
  %v375 = vsel %vm374, %v371, %v373
  %v376 = vsel %vm374, %v373, %v371
  %377 = vst [vmem:[#allocation2 + $0x50] sm:$0xff] %v375
  %378 = vst [vmem:[#allocation2 + $0x58] sm:$0xff] %v376
  %379 = vrot.lane.b32.xlu0 %v309, 113
  %v380 = vpop.permute.xlu0 %379
  %381 = vrot.lane.b32.xlu0 %v310, 113
  %v382 = vpop.permute.xlu0 %381
  %vm383 = vcmp.lt.s32.totalorder %v335, 113
  %v384 = vsel %vm383, %v380, %v382
  %v385 = vsel %vm383, %v382, %v380
  %386 = vst [vmem:[#allocation2 + $0x60] sm:$0xff] %v384
  %387 = vst [vmem:[#allocation2 + $0x68] sm:$0xff] %v385
  %388 = vrot.lane.b32.xlu0 %v309, 112
  %v389 = vpop.permute.xlu0 %388
  %390 = vrot.lane.b32.xlu0 %v310, 112
  %v391 = vpop.permute.xlu0 %390
  %vm392 = vcmp.lt.s32.totalorder %v335, 112
  %v393 = vsel %vm392, %v389, %v391
  %v394 = vsel %vm392, %v391, %v389
  %395 = vst [vmem:[#allocation2 + $0x70] sm:$0xff] %v393
  %396 = vst [vmem:[#allocation2 + $0x78] sm:$0xff] %v394
  %397 = vrot.lane.b32.xlu0 %v309, 111
  %v398 = vpop.permute.xlu0 %397
  %399 = vrot.lane.b32.xlu0 %v310, 111
  %v400 = vpop.permute.xlu0 %399
  %vm401 = vcmp.lt.s32.totalorder %v335, 111
  %v402 = vsel %vm401, %v398, %v400
  %v403 = vsel %vm401, %v400, %v398
  %404 = vst [vmem:[#allocation2 + $0x80] sm:$0xff] %v402
  %405 = vst [vmem:[#allocation2 + $0x88] sm:$0xff] %v403
  %v406 = vld [vmem:[#allocation2] sm:$0xff]
  %v407 = vld [vmem:[#allocation2 + $0x8] sm:$0xff]
  %v408 = vld [vmem:[#allocation2 + $0x10] sm:$0xff]
  %v409 = vld [vmem:[#allocation2 + $0x18] sm:$0xff]
  %v410 = vld [vmem:[#allocation2 + $0x20] sm:$0xff]
  %v411 = vld [vmem:[#allocation2 + $0x28] sm:$0xff]
  %v412 = vld [vmem:[#allocation2 + $0x30] sm:$0xff]
  %v413 = vld [vmem:[#allocation2 + $0x38] sm:$0xff]
  %v414 = vld [vmem:[#allocation2 + $0x40] sm:$0xff]
  %v415 = vld [vmem:[#allocation2 + $0x48] sm:$0xff]
  %v416 = vld [vmem:[#allocation2 + $0x50] sm:$0xff]
  %v417 = vld [vmem:[#allocation2 + $0x58] sm:$0xff]
  %v418 = vld [vmem:[#allocation2 + $0x60] sm:$0xff]
  %v419 = vld [vmem:[#allocation2 + $0x68] sm:$0xff]
  %v420 = vld [vmem:[#allocation2 + $0x70] sm:$0xff]
  %v421 = vld [vmem:[#allocation2 + $0x78] sm:$0xff]
  %v422 = vld [vmem:[#allocation2 + $0x80] sm:$0xff]
  %v423 = vld [vmem:[#allocation2 + $0x88] sm:$0xff]
  %v424 = vmul.f32 %v406, %v312
  %v425 = vmul.f32 %v407, %v313
  %v426 = vmul.f32 %v408, %v314
  %v427 = vmul.f32 %v409, %v315
  %v428 = vmul.f32 %v410, %v316
  %v429 = vmul.f32 %v411, %v317
  %v430 = vmul.f32 %v412, %v318
  %v431 = vmul.f32 %v413, %v319
  %v432 = vmul.f32 %v414, %v320
  %v433 = vmul.f32 %v415, %v321
  %v434 = vmul.f32 %v416, %v322
  %v435 = vmul.f32 %v417, %v323
  %v436 = vmul.f32 %v418, %v324
  %v437 = vmul.f32 %v419, %v325
  %v438 = vmul.f32 %v420, %v326
  %v439 = vmul.f32 %v421, %v327
  %v440 = vmul.f32 %v422, %v328
  %v441 = vmul.f32 %v423, %v329
  %vm442 = vcmask 588800
  %v444 = vsel %vm442, %v311, 0
  %446 = vmatprep.subr.mxu0 %v425
  %447 = vmatpush1.msra.mxu0 %v424
  %448 = vmatprep.subr.mxu0 %v427
  %449 = vmatpush1.msra.mxu0 %v426
  %450 = vmatprep.subr.mxu0 %v429
  %451 = vmatpush1.msra.mxu0 %v428
  %452 = vmatprep.subr.mxu0 %v431
  %453 = vmatpush1.msra.mxu0 %v430
  %454 = vmatprep.subr.mxu0 %v433
  %455 = vmatpush1.msra.mxu0 %v432
  %456 = vmatprep.subr.mxu0 %v435
  %457 = vmatpush1.msra.mxu0 %v434
  %458 = vmatprep.subr.mxu0 %v437
  %459 = vmatpush1.msra.mxu0 %v436
  %460 = vmatprep.subr.mxu0 %v439
  %461 = vmatpush1.msra.mxu0 %v438
  %462 = vmatprep.subr.mxu0 %v441
  %463 = vmatpush1.msra.mxu0 %v440
  %464 = vmatprep.subr.mxu0 0.0
  %465 = vmatpush1.msra.mxu0 0.0
  %466 = vmatprep.subr.mxu0 0.0
  %467 = vmatpush1.msra.mxu0 0.0
  %468 = vmatprep.subr.mxu0 0.0
  %469 = vmatpush1.msra.mxu0 0.0
  %470 = vmatprep.subr.mxu0 0.0
  %471 = vmatpush1.msra.mxu0 0.0
  %472 = vmatprep.subr.mxu0 0.0
  %473 = vmatpush1.msra.mxu0 0.0
  %474 = vmatprep.subr.mxu0 0.0
  %475 = vmatpush1.msra.mxu0 0.0
  %476 = vmatprep.subr.mxu0 0.0
  %477 = vmatpush1.msra.mxu0 0.0
  %478 = vmatprep.subr.mxu0 0.0
  %479 = vmatpush1.msra.mxu0 0.0
  %480 = vmatprep.subr.mxu0 0.0
  %481 = vmatpush1.msra.mxu0 0.0
  %482 = vmatprep.subr.mxu0 0.0
  %483 = vmatpush1.msra.mxu0 0.0
  %484 = vmatprep.subr.mxu0 0.0
  %485 = vmatpush1.msra.mxu0 0.0
  %486 = vmatprep.subr.mxu0 0.0
  %487 = vmatpush1.msra.mxu0 0.0
  %488 = vmatprep.subr.mxu0 0.0
  %489 = vmatpush1.msra.mxu0 0.0
  %490 = vmatprep.subr.mxu0 0.0
  %491 = vmatpush1.msra.mxu0 0.0
  %492 = vmatprep.subr.mxu0 0.0
  %493 = vmatpush1.msra.mxu0 0.0
  %494 = vmatprep.subr.mxu0 0.0
  %495 = vmatpush1.msra.mxu0 0.0
  %496 = vmatprep.subr.mxu0 0.0
  %497 = vmatpush1.msra.mxu0 0.0
  %498 = vmatprep.subr.mxu0 0.0
  %499 = vmatpush1.msra.mxu0 0.0
  %500 = vmatprep.subr.mxu0 0.0
  %501 = vmatpush1.msra.mxu0 0.0
  %502 = vmatprep.subr.mxu0 0.0
  %503 = vmatpush1.msra.mxu0 0.0
  %504 = vmatprep.subr.mxu0 0.0
  %505 = vmatpush1.msra.mxu0 0.0
  %506 = vmatprep.subr.mxu0 0.0
  %507 = vmatpush1.msra.mxu0 0.0
  %508 = vmatprep.subr.mxu0 0.0
  %509 = vmatpush1.msra.mxu0 0.0
  %510 = vmatprep.mubr.f32.mxu0 0.0
  %511 = vmatmul.mubr.f32.gmra.mrb[0].mxu0 %v444
  %v512 = vpop.f32.mrb[0].mxu0
  %v513 = vadd.f32 0.0, %v512
  %v514 = vpop.f32.mrb[0].mxu0
  %v515 = vadd.f32 0.0, %v514
  %516 = vdwg.mxu0
  %517 = vmatprep.subr.mxu0 %v30
  %518 = vmatpush1.msra.mxu0 %v29
  %519 = vmatprep.subr.mxu0 %v34
  %520 = vmatpush1.msra.mxu0 %v33
  %521 = vmatprep.subr.mxu0 %v38
  %522 = vmatpush1.msra.mxu0 %v37
  %523 = vmatprep.subr.mxu0 %v42
  %524 = vmatpush1.msra.mxu0 %v41
  %525 = vmatprep.subr.mxu0 %v46
  %526 = vmatpush1.msra.mxu0 %v45
  %527 = vmatprep.subr.mxu0 %v50
  %528 = vmatpush1.msra.mxu0 %v49
  %529 = vmatprep.subr.mxu0 %v54
  %530 = vmatpush1.msra.mxu0 %v53
  %531 = vmatprep.subr.mxu0 %v58
  %532 = vmatpush1.msra.mxu0 %v57
  %533 = vmatprep.subr.mxu0 %v62
  %534 = vmatpush1.msra.mxu0 %v61
  %535 = vmatprep.subr.mxu0 %v66
  %536 = vmatpush1.msra.mxu0 %v65
  %537 = vmatprep.subr.mxu0 %v70
  %538 = vmatpush1.msra.mxu0 %v69
  %539 = vmatprep.subr.mxu0 %v74
  %540 = vmatpush1.msra.mxu0 %v73
  %541 = vmatprep.subr.mxu0 %v78
  %542 = vmatpush1.msra.mxu0 %v77
  %543 = vmatprep.subr.mxu0 %v82
  %544 = vmatpush1.msra.mxu0 %v81
  %545 = vmatprep.subr.mxu0 %v86
  %546 = vmatpush1.msra.mxu0 %v85
  %547 = vmatprep.subr.mxu0 %v90
  %548 = vmatpush1.msra.mxu0 %v89
  %549 = vmatprep.subr.mxu0 %v94
  %550 = vmatpush1.msra.mxu0 %v93
  %551 = vmatprep.subr.mxu0 %v98
  %552 = vmatpush1.msra.mxu0 %v97
  %553 = vmatprep.subr.mxu0 %v102
  %554 = vmatpush1.msra.mxu0 %v101
  %555 = vmatprep.subr.mxu0 %v106
  %556 = vmatpush1.msra.mxu0 %v105
  %557 = vmatprep.subr.mxu0 %v110
  %558 = vmatpush1.msra.mxu0 %v109
  %559 = vmatprep.subr.mxu0 %v114
  %560 = vmatpush1.msra.mxu0 %v113
  %561 = vmatprep.subr.mxu0 %v118
  %562 = vmatpush1.msra.mxu0 %v117
  %563 = vmatprep.subr.mxu0 %v122
  %564 = vmatpush1.msra.mxu0 %v121
  %565 = vmatprep.subr.mxu0 %v126
  %566 = vmatpush1.msra.mxu0 %v125
  %567 = vmatprep.subr.mxu0 %v130
  %568 = vmatpush1.msra.mxu0 %v129
  %569 = vmatprep.subr.mxu0 %v134
  %570 = vmatpush1.msra.mxu0 %v133
  %571 = vmatprep.subr.mxu0 %v138
  %572 = vmatpush1.msra.mxu0 %v137
  %573 = vmatprep.subr.mxu0 %v142
  %574 = vmatpush1.msra.mxu0 %v141
  %575 = vmatprep.subr.mxu0 %v146
  %576 = vmatpush1.msra.mxu0 %v145
  %577 = vmatprep.subr.mxu0 %v150
  %578 = vmatpush1.msra.mxu0 %v149
  %579 = vmatprep.subr.mxu0 %v154
  %580 = vmatpush1.msra.mxu0 %v153
  %581 = vmatprep.mubr.f32.mxu0 %v515
  %582 = vmatmul.mubr.f32.gmra.mrb[0].mxu0 %v513
  %v583 = vpop.f32.mrb[0].mxu0
  %v584 = vadd.f32 0.0, %v583
  %v585 = vpop.f32.mrb[0].mxu0
  %v586 = vadd.f32 0.0, %v585
  %587 = vdwg.mxu0
  %588 = vmatprep.subr.mxu0 %v32
  %589 = vmatpush1.msra.mxu0 %v31
  %590 = vmatprep.subr.mxu0 %v36
  %591 = vmatpush1.msra.mxu0 %v35
  %592 = vmatprep.subr.mxu0 %v40
  %593 = vmatpush1.msra.mxu0 %v39
  %594 = vmatprep.subr.mxu0 %v44
  %595 = vmatpush1.msra.mxu0 %v43
  %596 = vmatprep.subr.mxu0 %v48
  %597 = vmatpush1.msra.mxu0 %v47
  %598 = vmatprep.subr.mxu0 %v52
  %599 = vmatpush1.msra.mxu0 %v51
  %600 = vmatprep.subr.mxu0 %v56
  %601 = vmatpush1.msra.mxu0 %v55
  %602 = vmatprep.subr.mxu0 %v60
  %603 = vmatpush1.msra.mxu0 %v59
  %604 = vmatprep.subr.mxu0 %v64
  %605 = vmatpush1.msra.mxu0 %v63
  %606 = vmatprep.subr.mxu0 %v68
  %607 = vmatpush1.msra.mxu0 %v67
  %608 = vmatprep.subr.mxu0 %v72
  %609 = vmatpush1.msra.mxu0 %v71
  %610 = vmatprep.subr.mxu0 %v76
  %611 = vmatpush1.msra.mxu0 %v75
  %612 = vmatprep.subr.mxu0 %v80
  %613 = vmatpush1.msra.mxu0 %v79
  %614 = vmatprep.subr.mxu0 %v84
  %615 = vmatpush1.msra.mxu0 %v83
  %616 = vmatprep.subr.mxu0 %v88
  %617 = vmatpush1.msra.mxu0 %v87
  %618 = vmatprep.subr.mxu0 %v92
  %619 = vmatpush1.msra.mxu0 %v91
  %620 = vmatprep.subr.mxu0 %v96
  %621 = vmatpush1.msra.mxu0 %v95
  %622 = vmatprep.subr.mxu0 %v100
  %623 = vmatpush1.msra.mxu0 %v99
  %624 = vmatprep.subr.mxu0 %v104
  %625 = vmatpush1.msra.mxu0 %v103
  %626 = vmatprep.subr.mxu0 %v108
  %627 = vmatpush1.msra.mxu0 %v107
  %628 = vmatprep.subr.mxu0 %v112
  %629 = vmatpush1.msra.mxu0 %v111
  %630 = vmatprep.subr.mxu0 %v116
  %631 = vmatpush1.msra.mxu0 %v115
  %632 = vmatprep.subr.mxu0 %v120
  %633 = vmatpush1.msra.mxu0 %v119
  %634 = vmatprep.subr.mxu0 %v124
  %635 = vmatpush1.msra.mxu0 %v123
  %636 = vmatprep.subr.mxu0 %v128
  %637 = vmatpush1.msra.mxu0 %v127
  %638 = vmatprep.subr.mxu0 %v132
  %639 = vmatpush1.msra.mxu0 %v131
  %640 = vmatprep.subr.mxu0 %v136
  %641 = vmatpush1.msra.mxu0 %v135
  %642 = vmatprep.subr.mxu0 %v140
  %643 = vmatpush1.msra.mxu0 %v139
  %644 = vmatprep.subr.mxu0 %v144
  %645 = vmatpush1.msra.mxu0 %v143
  %646 = vmatprep.subr.mxu0 %v148
  %647 = vmatpush1.msra.mxu0 %v147
  %648 = vmatprep.subr.mxu0 %v152
  %649 = vmatpush1.msra.mxu0 %v151
  %650 = vmatprep.subr.mxu0 %v156
  %651 = vmatpush1.msra.mxu0 %v155
  %652 = vmatprep.mubr.f32.mxu0 %v515
  %653 = vmatmul.mubr.f32.gmra.mrb[0].mxu0 %v513
  %v654 = vpop.f32.mrb[0].mxu0
  %v655 = vadd.f32 0.0, %v654
  %v656 = vpop.f32.mrb[0].mxu0
  %v657 = vadd.f32 0.0, %v656
  %658 = vdwg.mxu0
  %vm659 = vcmask 1047556
  %v660 = vrot.slane %v655, 4
  %v661 = vsel %vm659, %v660, %v655
  %v662 = vrot.slane %v657, 4
  %v663 = vsel %vm659, %v662, %v657
  %v664 = vrot.slane %v661, 4
  %v665 = vrot.slane %v663, 4
  %v666 = vsel %vm659, %v664, %v655
  %v667 = vsel %vm659, %v665, %v657
  %vm668 = vcmp.lt.s32.totalorder %v304, 2
  %v669 = vsel %vm668, 1.0, -1.0
  %v672 = vrot.slane %v666, 2
  %v673 = vrot.slane %v667, 2
  %v676 = vmul.f32 %v669, %v672
  %v677 = vmul.f32 %v669, %v673
  %v678 = vsub.f32 %v584, %v676
  %v679 = vsub.f32 %v586, %v677
  %v680 = vmul.f32 %v678, 0.00390625
  %v681 = vmul.f32 %v679, 0.00390625
  %v682 = vld [vmem:[%s4] sm:$0xf]
  %v683 = vld [vmem:[%s2] sm:$0xff]
  %v684 = vld [vmem:[%s2 + $0x8] sm:$0xff]
  %v685 = vld [vmem:[%s2 + $0x10] sm:$0xff]
  %v686 = vld [vmem:[%s2 + $0x18] sm:$0xff]
  %v687 = vld [vmem:[%s2 + $0x20] sm:$0xff]
  %v688 = vld [vmem:[%s2 + $0x28] sm:$0xff]
  %v689 = vld [vmem:[%s2 + $0x30] sm:$0xff]
  %v690 = vld [vmem:[%s2 + $0x38] sm:$0xff]
  %v691 = vld [vmem:[%s2 + $0x40] sm:$0xff]
  %v692 = vld [vmem:[%s2 + $0x48] sm:$0xff]
  %v693 = vld [vmem:[%s2 + $0x50] sm:$0xff]
  %v694 = vld [vmem:[%s2 + $0x58] sm:$0xff]
  %v695 = vld [vmem:[%s2 + $0x60] sm:$0xff]
  %v696 = vld [vmem:[%s2 + $0x68] sm:$0xff]
  %v697 = vld [vmem:[%s2 + $0x70] sm:$0xff]
  %v698 = vld [vmem:[%s2 + $0x78] sm:$0xff]
  %v699 = vld [vmem:[%s2 + $0x80] sm:$0xff]
  %v700 = vld [vmem:[%s2 + $0x88] sm:$0xff]
  %701 = vrot.lane.b32.xlu0 %v157, 17
  %v702 = vpop.permute.xlu0 %701
  %703 = vrot.lane.b32.xlu0 %v158, 17
  %v704 = vpop.permute.xlu0 %703
  %v705 = vsel %vm336, %v702, %v704
  %v706 = vsel %vm336, %v704, %v702
  %707 = vst [vmem:[#allocation2] sm:$0xff] %v706
  %708 = vst [vmem:[#allocation2 + $0x8] sm:$0xff] %v705
  %709 = vrot.lane.b32.xlu0 %v157, 16
  %v710 = vpop.permute.xlu0 %709
  %711 = vrot.lane.b32.xlu0 %v158, 16
  %v712 = vpop.permute.xlu0 %711
  %v713 = vsel %vm345, %v710, %v712
  %v714 = vsel %vm345, %v712, %v710
  %715 = vst [vmem:[#allocation2 + $0x10] sm:$0xff] %v714
  %716 = vst [vmem:[#allocation2 + $0x18] sm:$0xff] %v713
  %717 = vrot.lane.b32.xlu0 %v157, 15
  %v718 = vpop.permute.xlu0 %717
  %719 = vrot.lane.b32.xlu0 %v158, 15
  %v720 = vpop.permute.xlu0 %719
  %v721 = vsel %vm354, %v718, %v720
  %v722 = vsel %vm354, %v720, %v718
  %723 = vst [vmem:[#allocation2 + $0x20] sm:$0xff] %v722
  %724 = vst [vmem:[#allocation2 + $0x28] sm:$0xff] %v721
  %725 = vrot.lane.b32.xlu0 %v157, 1
  %v726 = vpop.permute.xlu0 %725
  %727 = vrot.lane.b32.xlu0 %v158, 1
  %v728 = vpop.permute.xlu0 %727
  %v729 = vsel %vm363, %v726, %v728
  %v730 = vsel %vm363, %v728, %v726
  %731 = vst [vmem:[#allocation2 + $0x30] sm:$0xff] %v730
  %732 = vst [vmem:[#allocation2 + $0x38] sm:$0xff] %v729
  %733 = vst [vmem:[#allocation2 + $0x40] sm:$0xff] %v157
  %734 = vst [vmem:[#allocation2 + $0x48] sm:$0xff] %v158
  %735 = vrot.lane.b32.xlu0 %v157, 127
  %v736 = vpop.permute.xlu0 %735
  %737 = vrot.lane.b32.xlu0 %v158, 127
  %v738 = vpop.permute.xlu0 %737
  %v739 = vsel %vm374, %v736, %v738
  %v740 = vsel %vm374, %v738, %v736
  %741 = vst [vmem:[#allocation2 + $0x50] sm:$0xff] %v739
  %742 = vst [vmem:[#allocation2 + $0x58] sm:$0xff] %v740
  %743 = vrot.lane.b32.xlu0 %v157, 113
  %v744 = vpop.permute.xlu0 %743
  %745 = vrot.lane.b32.xlu0 %v158, 113
  %v746 = vpop.permute.xlu0 %745
  %v747 = vsel %vm383, %v744, %v746
  %v748 = vsel %vm383, %v746, %v744
  %749 = vst [vmem:[#allocation2 + $0x60] sm:$0xff] %v747
  %750 = vst [vmem:[#allocation2 + $0x68] sm:$0xff] %v748
  %751 = vrot.lane.b32.xlu0 %v157, 112
  %v752 = vpop.permute.xlu0 %751
  %753 = vrot.lane.b32.xlu0 %v158, 112
  %v754 = vpop.permute.xlu0 %753
  %v755 = vsel %vm392, %v752, %v754
  %v756 = vsel %vm392, %v754, %v752
  %757 = vst [vmem:[#allocation2 + $0x70] sm:$0xff] %v755
  %758 = vst [vmem:[#allocation2 + $0x78] sm:$0xff] %v756
  %759 = vrot.lane.b32.xlu0 %v157, 111
  %v760 = vpop.permute.xlu0 %759
  %761 = vrot.lane.b32.xlu0 %v158, 111
  %v762 = vpop.permute.xlu0 %761
  %v763 = vsel %vm401, %v760, %v762
  %v764 = vsel %vm401, %v762, %v760
  %765 = vst [vmem:[#allocation2 + $0x80] sm:$0xff] %v763
  %766 = vst [vmem:[#allocation2 + $0x88] sm:$0xff] %v764
  %v767 = vld [vmem:[#allocation2] sm:$0xff]
  %v768 = vld [vmem:[#allocation2 + $0x8] sm:$0xff]
  %v769 = vld [vmem:[#allocation2 + $0x10] sm:$0xff]
  %v770 = vld [vmem:[#allocation2 + $0x18] sm:$0xff]
  %v771 = vld [vmem:[#allocation2 + $0x20] sm:$0xff]
  %v772 = vld [vmem:[#allocation2 + $0x28] sm:$0xff]
  %v773 = vld [vmem:[#allocation2 + $0x30] sm:$0xff]
  %v774 = vld [vmem:[#allocation2 + $0x38] sm:$0xff]
  %v775 = vld [vmem:[#allocation2 + $0x40] sm:$0xff]
  %v776 = vld [vmem:[#allocation2 + $0x48] sm:$0xff]
  %v777 = vld [vmem:[#allocation2 + $0x50] sm:$0xff]
  %v778 = vld [vmem:[#allocation2 + $0x58] sm:$0xff]
  %v779 = vld [vmem:[#allocation2 + $0x60] sm:$0xff]
  %v780 = vld [vmem:[#allocation2 + $0x68] sm:$0xff]
  %v781 = vld [vmem:[#allocation2 + $0x70] sm:$0xff]
  %v782 = vld [vmem:[#allocation2 + $0x78] sm:$0xff]
  %v783 = vld [vmem:[#allocation2 + $0x80] sm:$0xff]
  %v784 = vld [vmem:[#allocation2 + $0x88] sm:$0xff]
  %v785 = vmul.f32 %v767, %v683
  %v786 = vmul.f32 %v768, %v684
  %v787 = vmul.f32 %v769, %v685
  %v788 = vmul.f32 %v770, %v686
  %v789 = vmul.f32 %v771, %v687
  %v790 = vmul.f32 %v772, %v688
  %v791 = vmul.f32 %v773, %v689
  %v792 = vmul.f32 %v774, %v690
  %v793 = vmul.f32 %v775, %v691
  %v794 = vmul.f32 %v776, %v692
  %v795 = vmul.f32 %v777, %v693
  %v796 = vmul.f32 %v778, %v694
  %v797 = vmul.f32 %v779, %v695
  %v798 = vmul.f32 %v780, %v696
  %v799 = vmul.f32 %v781, %v697
  %v800 = vmul.f32 %v782, %v698
  %v801 = vmul.f32 %v783, %v699
  %v802 = vmul.f32 %v784, %v700
  %v804 = vsel %vm442, %v682, 0
  %806 = vmatprep.subr.mxu0 %v786
  %807 = vmatpush1.msra.mxu0 %v785
  %808 = vmatprep.subr.mxu0 %v788
  %809 = vmatpush1.msra.mxu0 %v787
  %810 = vmatprep.subr.mxu0 %v790
  %811 = vmatpush1.msra.mxu0 %v789
  %812 = vmatprep.subr.mxu0 %v792
  %813 = vmatpush1.msra.mxu0 %v791
  %814 = vmatprep.subr.mxu0 %v794
  %815 = vmatpush1.msra.mxu0 %v793
  %816 = vmatprep.subr.mxu0 %v796
  %817 = vmatpush1.msra.mxu0 %v795
  %818 = vmatprep.subr.mxu0 %v798
  %819 = vmatpush1.msra.mxu0 %v797
  %820 = vmatprep.subr.mxu0 %v800
  %821 = vmatpush1.msra.mxu0 %v799
  %822 = vmatprep.subr.mxu0 %v802
  %823 = vmatpush1.msra.mxu0 %v801
  %824 = vmatprep.subr.mxu0 0.0
  %825 = vmatpush1.msra.mxu0 0.0
  %826 = vmatprep.subr.mxu0 0.0
  %827 = vmatpush1.msra.mxu0 0.0
  %828 = vmatprep.subr.mxu0 0.0
  %829 = vmatpush1.msra.mxu0 0.0
  %830 = vmatprep.subr.mxu0 0.0
  %831 = vmatpush1.msra.mxu0 0.0
  %832 = vmatprep.subr.mxu0 0.0
  %833 = vmatpush1.msra.mxu0 0.0
  %834 = vmatprep.subr.mxu0 0.0
  %835 = vmatpush1.msra.mxu0 0.0
  %836 = vmatprep.subr.mxu0 0.0
  %837 = vmatpush1.msra.mxu0 0.0
  %838 = vmatprep.subr.mxu0 0.0
  %839 = vmatpush1.msra.mxu0 0.0
  %840 = vmatprep.subr.mxu0 0.0
  %841 = vmatpush1.msra.mxu0 0.0
  %842 = vmatprep.subr.mxu0 0.0
  %843 = vmatpush1.msra.mxu0 0.0
  %844 = vmatprep.subr.mxu0 0.0
  %845 = vmatpush1.msra.mxu0 0.0
  %846 = vmatprep.subr.mxu0 0.0
  %847 = vmatpush1.msra.mxu0 0.0
  %848 = vmatprep.subr.mxu0 0.0
  %849 = vmatpush1.msra.mxu0 0.0
  %850 = vmatprep.subr.mxu0 0.0
  %851 = vmatpush1.msra.mxu0 0.0
  %852 = vmatprep.subr.mxu0 0.0
  %853 = vmatpush1.msra.mxu0 0.0
  %854 = vmatprep.subr.mxu0 0.0
  %855 = vmatpush1.msra.mxu0 0.0
  %856 = vmatprep.subr.mxu0 0.0
  %857 = vmatpush1.msra.mxu0 0.0
  %858 = vmatprep.subr.mxu0 0.0
  %859 = vmatpush1.msra.mxu0 0.0
  %860 = vmatprep.subr.mxu0 0.0
  %861 = vmatpush1.msra.mxu0 0.0
  %862 = vmatprep.subr.mxu0 0.0
  %863 = vmatpush1.msra.mxu0 0.0
  %864 = vmatprep.subr.mxu0 0.0
  %865 = vmatpush1.msra.mxu0 0.0
  %866 = vmatprep.subr.mxu0 0.0
  %867 = vmatpush1.msra.mxu0 0.0
  %868 = vmatprep.subr.mxu0 0.0
  %869 = vmatpush1.msra.mxu0 0.0
  %870 = vmatprep.mubr.f32.mxu0 0.0
  %871 = vmatmul.mubr.f32.gmra.mrb[0].mxu0 %v804
  %v872 = vpop.f32.mrb[0].mxu0
  %v873 = vadd.f32 0.0, %v872
  %v874 = vpop.f32.mrb[0].mxu0
  %v875 = vadd.f32 0.0, %v874
  %876 = vdwg.mxu0
  %vm877 = vcmask 1043456
  %v878 = vsel %vm877, %v873, 0.0
  %v879 = vsel %vm877, %v875, 0.0
  %v880 = vadd.f32 %v878, %v879
  %881 = vadd.xlane.f32.xlu0 %v880
  %v882 = vpop.xlane.xlu0 %881
  %v883 = vrcp.pop 256.0
  %v884 = vmul.f32 %v882, %v883
  %v885 = vsub.f32 %v873, %v884
  %v886 = vsub.f32 %v875, %v884
  %v887 = vmul.f32 %v885, %v885
  %v888 = vmul.f32 %v886, %v886
  %v889 = vsel %vm877, %v887, 0.0
  %v890 = vsel %vm877, %v888, 0.0
  %v891 = vadd.f32 %v889, %v890
  %892 = vadd.xlane.f32.xlu0 %v891
  %v893 = vpop.xlane.xlu0 %892
  %v894 = vmul.f32 %v893, %v883
  %v895 = vadd.f32 %v894, 1e-05
  %v896 = vrsqrt.pop %v895
  %v897 = vmul.f32 %v885, %v896
  %v898 = vmul.f32 %v886, %v896
  %vm899 = vcmp.ge.f32.partialorder %v897, 0.0
  %vm900 = vcmp.ge.f32.partialorder %v898, 0.0
  %v901 = vmul.f32 %v897, 0.2
  %v902 = vmul.f32 %v898, 0.2
  %v903 = vsel %vm899, %v897, %v901
  %v904 = vsel %vm900, %v898, %v902
  %v905 = vsel %vm877, %v680, 0.0
  %v906 = vsel %vm877, %v681, 0.0
  %v907 = vadd.f32 %v905, %v906
  %908 = vadd.xlane.f32.xlu0 %v907
  %v909 = vpop.xlane.xlu0 %908
  %v910 = vmul.f32 %v909, %v883
  %v911 = vsub.f32 %v680, %v910
  %v912 = vsub.f32 %v681, %v910
  %v913 = vmul.f32 %v911, %v911
  %v914 = vmul.f32 %v912, %v912
  %v915 = vsel %vm877, %v913, 0.0
  %v916 = vsel %vm877, %v914, 0.0
  %v917 = vadd.f32 %v915, %v916
  %918 = vadd.xlane.f32.xlu0 %v917
  %v919 = vpop.xlane.xlu0 %918
  %v920 = vmul.f32 %v919, %v883
  %v921 = vadd.f32 %v920, 1e-05
  %v922 = vrsqrt.pop %v921
  %v923 = vmul.f32 %v911, %v922
  %v924 = vmul.f32 %v912, %v922
  %vm925 = vcmp.ge.f32.partialorder %v923, 0.0
  %vm926 = vcmp.ge.f32.partialorder %v924, 0.0
  %v927 = vmul.f32 %v923, 0.2
  %v928 = vmul.f32 %v924, 0.2
  %v929 = vsel %vm925, %v923, %v927
  %v930 = vsel %vm926, %v924, %v928
  %931 = vst [vmem:[#allocation3] sm:$0x3] %v903
  %932 = vst [vmem:[#allocation3 + $0x8] sm:$0x3] %v904
  %v935 = vrot.slane %v929, 6
  %v936 = vrot.slane %v930, 6
  %939 = vst [vmem:[#allocation3] sm:$0xc] %v935
  %940 = vst [vmem:[#allocation3 + $0x8] sm:$0xc] %v936
  %v943 = vrot.slane %v903, 6
  %v944 = vrot.slane %v904, 6
  %947 = vst [vmem:[#allocation3] sm:$0x30] %v943
  %948 = vst [vmem:[#allocation3 + $0x8] sm:$0x30] %v944
  %v949 = vrot.slane %v929, 4
  %v950 = vrot.slane %v930, 4
  %953 = vst [vmem:[#allocation3] sm:$0xc0] %v949
  %954 = vst [vmem:[#allocation3 + $0x8] sm:$0xc0] %v950
  %v955 = vld [vmem:[#allocation3] sm:$0xff]
  %v956 = vld [vmem:[#allocation3 + $0x8] sm:$0xff]
  %957 = vmatprep.subr.mxu0 %v30
  %958 = vmatpush1.msra.mxu0 %v29
  %959 = vmatprep.subr.mxu0 %v34
  %960 = vmatpush1.msra.mxu0 %v33
  %961 = vmatprep.subr.mxu0 %v38
  %962 = vmatpush1.msra.mxu0 %v37
  %963 = vmatprep.subr.mxu0 %v42
  %964 = vmatpush1.msra.mxu0 %v41
  %965 = vmatprep.subr.mxu0 %v46
  %966 = vmatpush1.msra.mxu0 %v45
  %967 = vmatprep.subr.mxu0 %v50
  %968 = vmatpush1.msra.mxu0 %v49
  %969 = vmatprep.subr.mxu0 %v54
  %970 = vmatpush1.msra.mxu0 %v53
  %971 = vmatprep.subr.mxu0 %v58
  %972 = vmatpush1.msra.mxu0 %v57
  %973 = vmatprep.subr.mxu0 %v62
  %974 = vmatpush1.msra.mxu0 %v61
  %975 = vmatprep.subr.mxu0 %v66
  %976 = vmatpush1.msra.mxu0 %v65
  %977 = vmatprep.subr.mxu0 %v70
  %978 = vmatpush1.msra.mxu0 %v69
  %979 = vmatprep.subr.mxu0 %v74
  %980 = vmatpush1.msra.mxu0 %v73
  %981 = vmatprep.subr.mxu0 %v78
  %982 = vmatpush1.msra.mxu0 %v77
  %983 = vmatprep.subr.mxu0 %v82
  %984 = vmatpush1.msra.mxu0 %v81
  %985 = vmatprep.subr.mxu0 %v86
  %986 = vmatpush1.msra.mxu0 %v85
  %987 = vmatprep.subr.mxu0 %v90
  %988 = vmatpush1.msra.mxu0 %v89
  %989 = vmatprep.subr.mxu0 %v94
  %990 = vmatpush1.msra.mxu0 %v93
  %991 = vmatprep.subr.mxu0 %v98
  %992 = vmatpush1.msra.mxu0 %v97
  %993 = vmatprep.subr.mxu0 %v102
  %994 = vmatpush1.msra.mxu0 %v101
  %995 = vmatprep.subr.mxu0 %v106
  %996 = vmatpush1.msra.mxu0 %v105
  %997 = vmatprep.subr.mxu0 %v110
  %998 = vmatpush1.msra.mxu0 %v109
  %999 = vmatprep.subr.mxu0 %v114
  %1000 = vmatpush1.msra.mxu0 %v113
  %1001 = vmatprep.subr.mxu0 %v118
  %1002 = vmatpush1.msra.mxu0 %v117
  %1003 = vmatprep.subr.mxu0 %v122
  %1004 = vmatpush1.msra.mxu0 %v121
  %1005 = vmatprep.subr.mxu0 %v126
  %1006 = vmatpush1.msra.mxu0 %v125
  %1007 = vmatprep.subr.mxu0 %v130
  %1008 = vmatpush1.msra.mxu0 %v129
  %1009 = vmatprep.subr.mxu0 %v134
  %1010 = vmatpush1.msra.mxu0 %v133
  %1011 = vmatprep.subr.mxu0 %v138
  %1012 = vmatpush1.msra.mxu0 %v137
  %1013 = vmatprep.subr.mxu0 %v142
  %1014 = vmatpush1.msra.mxu0 %v141
  %1015 = vmatprep.subr.mxu0 %v146
  %1016 = vmatpush1.msra.mxu0 %v145
  %1017 = vmatprep.subr.mxu0 %v150
  %1018 = vmatpush1.msra.mxu0 %v149
  %1019 = vmatprep.subr.mxu0 %v154
  %1020 = vmatpush1.msra.mxu0 %v153
  %1021 = vmatprep.mubr.f32.mxu0 %v956
  %1022 = vmatmul.mubr.f32.gmra.mrb[0].mxu0 %v955
  %v1023 = vpop.f32.mrb[0].mxu0
  %v1024 = vadd.f32 0.0, %v1023
  %v1025 = vpop.f32.mrb[0].mxu0
  %v1026 = vadd.f32 0.0, %v1025
  %1027 = vdwg.mxu0
  %1028 = vmatprep.subr.mxu0 %v32
  %1029 = vmatpush1.msra.mxu0 %v31
  %1030 = vmatprep.subr.mxu0 %v36
  %1031 = vmatpush1.msra.mxu0 %v35
  %1032 = vmatprep.subr.mxu0 %v40
  %1033 = vmatpush1.msra.mxu0 %v39
  %1034 = vmatprep.subr.mxu0 %v44
  %1035 = vmatpush1.msra.mxu0 %v43
  %1036 = vmatprep.subr.mxu0 %v48
  %1037 = vmatpush1.msra.mxu0 %v47
  %1038 = vmatprep.subr.mxu0 %v52
  %1039 = vmatpush1.msra.mxu0 %v51
  %1040 = vmatprep.subr.mxu0 %v56
  %1041 = vmatpush1.msra.mxu0 %v55
  %1042 = vmatprep.subr.mxu0 %v60
  %1043 = vmatpush1.msra.mxu0 %v59
  %1044 = vmatprep.subr.mxu0 %v64
  %1045 = vmatpush1.msra.mxu0 %v63
  %1046 = vmatprep.subr.mxu0 %v68
  %1047 = vmatpush1.msra.mxu0 %v67
  %1048 = vmatprep.subr.mxu0 %v72
  %1049 = vmatpush1.msra.mxu0 %v71
  %1050 = vmatprep.subr.mxu0 %v76
  %1051 = vmatpush1.msra.mxu0 %v75
  %1052 = vmatprep.subr.mxu0 %v80
  %1053 = vmatpush1.msra.mxu0 %v79
  %1054 = vmatprep.subr.mxu0 %v84
  %1055 = vmatpush1.msra.mxu0 %v83
  %1056 = vmatprep.subr.mxu0 %v88
  %1057 = vmatpush1.msra.mxu0 %v87
  %1058 = vmatprep.subr.mxu0 %v92
  %1059 = vmatpush1.msra.mxu0 %v91
  %1060 = vmatprep.subr.mxu0 %v96
  %1061 = vmatpush1.msra.mxu0 %v95
  %1062 = vmatprep.subr.mxu0 %v100
  %1063 = vmatpush1.msra.mxu0 %v99
  %1064 = vmatprep.subr.mxu0 %v104
  %1065 = vmatpush1.msra.mxu0 %v103
  %1066 = vmatprep.subr.mxu0 %v108
  %1067 = vmatpush1.msra.mxu0 %v107
  %1068 = vmatprep.subr.mxu0 %v112
  %1069 = vmatpush1.msra.mxu0 %v111
  %1070 = vmatprep.subr.mxu0 %v116
  %1071 = vmatpush1.msra.mxu0 %v115
  %1072 = vmatprep.subr.mxu0 %v120
  %1073 = vmatpush1.msra.mxu0 %v119
  %1074 = vmatprep.subr.mxu0 %v124
  %1075 = vmatpush1.msra.mxu0 %v123
  %1076 = vmatprep.subr.mxu0 %v128
  %1077 = vmatpush1.msra.mxu0 %v127
  %1078 = vmatprep.subr.mxu0 %v132
  %1079 = vmatpush1.msra.mxu0 %v131
  %1080 = vmatprep.subr.mxu0 %v136
  %1081 = vmatpush1.msra.mxu0 %v135
  %1082 = vmatprep.subr.mxu0 %v140
  %1083 = vmatpush1.msra.mxu0 %v139
  %1084 = vmatprep.subr.mxu0 %v144
  %1085 = vmatpush1.msra.mxu0 %v143
  %1086 = vmatprep.subr.mxu0 %v148
  %1087 = vmatpush1.msra.mxu0 %v147
  %1088 = vmatprep.subr.mxu0 %v152
  %1089 = vmatpush1.msra.mxu0 %v151
  %1090 = vmatprep.subr.mxu0 %v156
  %1091 = vmatpush1.msra.mxu0 %v155
  %1092 = vmatprep.mubr.f32.mxu0 %v956
  %1093 = vmatmul.mubr.f32.gmra.mrb[0].mxu0 %v955
  %v1094 = vpop.f32.mrb[0].mxu0
  %v1095 = vadd.f32 0.0, %v1094
  %v1096 = vpop.f32.mrb[0].mxu0
  %v1097 = vadd.f32 0.0, %v1096
  %1098 = vdwg.mxu0
  %v1099 = vrot.slane %v1095, 4
  %v1100 = vrot.slane %v1097, 4
  %v1101 = vmul.f32 %v306, %v1099
  %v1102 = vmul.f32 %v306, %v1100
  %v1103 = vadd.f32 %v1024, %v1101
  %v1104 = vadd.f32 %v1026, %v1102
  %v1105 = vld [vmem:[%s7] sm:$0xf]
  %v1106 = vld [vmem:[%s3] sm:$0xff]
  %v1107 = vld [vmem:[%s3 + $0x8] sm:$0xff]
  %v1108 = vld [vmem:[%s3 + $0x10] sm:$0xff]
  %v1109 = vld [vmem:[%s3 + $0x18] sm:$0xff]
  %v1110 = vld [vmem:[%s3 + $0x20] sm:$0xff]
  %v1111 = vld [vmem:[%s3 + $0x28] sm:$0xff]
  %v1112 = vld [vmem:[%s3 + $0x30] sm:$0xff]
  %v1113 = vld [vmem:[%s3 + $0x38] sm:$0xff]
  %v1114 = vld [vmem:[%s3 + $0x40] sm:$0xff]
  %v1115 = vld [vmem:[%s3 + $0x48] sm:$0xff]
  %v1116 = vld [vmem:[%s3 + $0x50] sm:$0xff]
  %v1117 = vld [vmem:[%s3 + $0x58] sm:$0xff]
  %v1118 = vld [vmem:[%s3 + $0x60] sm:$0xff]
  %v1119 = vld [vmem:[%s3 + $0x68] sm:$0xff]
  %v1120 = vld [vmem:[%s3 + $0x70] sm:$0xff]
  %v1121 = vld [vmem:[%s3 + $0x78] sm:$0xff]
  %v1122 = vld [vmem:[%s3 + $0x80] sm:$0xff]
  %v1123 = vld [vmem:[%s3 + $0x88] sm:$0xff]
  %1124 = vrot.lane.b32.xlu0 %v1103, 17
  %v1125 = vpop.permute.xlu0 %1124
  %1126 = vrot.lane.b32.xlu0 %v1104, 17
  %v1127 = vpop.permute.xlu0 %1126
  %v1128 = vsel %vm336, %v1125, %v1127
  %v1129 = vsel %vm336, %v1127, %v1125
  %1130 = vst [vmem:[#allocation2] sm:$0xff] %v1129
  %1131 = vst [vmem:[#allocation2 + $0x8] sm:$0xff] %v1128
  %1132 = vrot.lane.b32.xlu0 %v1103, 16
  %v1133 = vpop.permute.xlu0 %1132
  %1134 = vrot.lane.b32.xlu0 %v1104, 16
  %v1135 = vpop.permute.xlu0 %1134
  %v1136 = vsel %vm345, %v1133, %v1135
  %v1137 = vsel %vm345, %v1135, %v1133
  %1138 = vst [vmem:[#allocation2 + $0x10] sm:$0xff] %v1137
  %1139 = vst [vmem:[#allocation2 + $0x18] sm:$0xff] %v1136
  %1140 = vrot.lane.b32.xlu0 %v1103, 15
  %v1141 = vpop.permute.xlu0 %1140
  %1142 = vrot.lane.b32.xlu0 %v1104, 15
  %v1143 = vpop.permute.xlu0 %1142
  %v1144 = vsel %vm354, %v1141, %v1143
  %v1145 = vsel %vm354, %v1143, %v1141
  %1146 = vst [vmem:[#allocation2 + $0x20] sm:$0xff] %v1145
  %1147 = vst [vmem:[#allocation2 + $0x28] sm:$0xff] %v1144
  %1148 = vrot.lane.b32.xlu0 %v1103, 1
  %v1149 = vpop.permute.xlu0 %1148
  %1150 = vrot.lane.b32.xlu0 %v1104, 1
  %v1151 = vpop.permute.xlu0 %1150
  %v1152 = vsel %vm363, %v1149, %v1151
  %v1153 = vsel %vm363, %v1151, %v1149
  %1154 = vst [vmem:[#allocation2 + $0x30] sm:$0xff] %v1153
  %1155 = vst [vmem:[#allocation2 + $0x38] sm:$0xff] %v1152
  %1156 = vst [vmem:[#allocation2 + $0x40] sm:$0xff] %v1103
  %1157 = vst [vmem:[#allocation2 + $0x48] sm:$0xff] %v1104
  %1158 = vrot.lane.b32.xlu0 %v1103, 127
  %v1159 = vpop.permute.xlu0 %1158
  %1160 = vrot.lane.b32.xlu0 %v1104, 127
  %v1161 = vpop.permute.xlu0 %1160
  %v1162 = vsel %vm374, %v1159, %v1161
  %v1163 = vsel %vm374, %v1161, %v1159
  %1164 = vst [vmem:[#allocation2 + $0x50] sm:$0xff] %v1162
  %1165 = vst [vmem:[#allocation2 + $0x58] sm:$0xff] %v1163
  %1166 = vrot.lane.b32.xlu0 %v1103, 113
  %v1167 = vpop.permute.xlu0 %1166
  %1168 = vrot.lane.b32.xlu0 %v1104, 113
  %v1169 = vpop.permute.xlu0 %1168
  %v1170 = vsel %vm383, %v1167, %v1169
  %v1171 = vsel %vm383, %v1169, %v1167
  %1172 = vst [vmem:[#allocation2 + $0x60] sm:$0xff] %v1170
  %1173 = vst [vmem:[#allocation2 + $0x68] sm:$0xff] %v1171
  %1174 = vrot.lane.b32.xlu0 %v1103, 112
  %v1175 = vpop.permute.xlu0 %1174
  %1176 = vrot.lane.b32.xlu0 %v1104, 112
  %v1177 = vpop.permute.xlu0 %1176
  %v1178 = vsel %vm392, %v1175, %v1177
  %v1179 = vsel %vm392, %v1177, %v1175
  %1180 = vst [vmem:[#allocation2 + $0x70] sm:$0xff] %v1178
  %1181 = vst [vmem:[#allocation2 + $0x78] sm:$0xff] %v1179
  %1182 = vrot.lane.b32.xlu0 %v1103, 111
  %v1183 = vpop.permute.xlu0 %1182
  %1184 = vrot.lane.b32.xlu0 %v1104, 111
  %v1185 = vpop.permute.xlu0 %1184
  %v1186 = vsel %vm401, %v1183, %v1185
  %v1187 = vsel %vm401, %v1185, %v1183
  %1188 = vst [vmem:[#allocation2 + $0x80] sm:$0xff] %v1186
  %1189 = vst [vmem:[#allocation2 + $0x88] sm:$0xff] %v1187
  %v1190 = vld [vmem:[#allocation2] sm:$0xff]
  %v1191 = vld [vmem:[#allocation2 + $0x8] sm:$0xff]
  %v1192 = vld [vmem:[#allocation2 + $0x10] sm:$0xff]
  %v1193 = vld [vmem:[#allocation2 + $0x18] sm:$0xff]
  %v1194 = vld [vmem:[#allocation2 + $0x20] sm:$0xff]
  %v1195 = vld [vmem:[#allocation2 + $0x28] sm:$0xff]
  %v1196 = vld [vmem:[#allocation2 + $0x30] sm:$0xff]
  %v1197 = vld [vmem:[#allocation2 + $0x38] sm:$0xff]
  %v1198 = vld [vmem:[#allocation2 + $0x40] sm:$0xff]
  %v1199 = vld [vmem:[#allocation2 + $0x48] sm:$0xff]
  %v1200 = vld [vmem:[#allocation2 + $0x50] sm:$0xff]
  %v1201 = vld [vmem:[#allocation2 + $0x58] sm:$0xff]
  %v1202 = vld [vmem:[#allocation2 + $0x60] sm:$0xff]
  %v1203 = vld [vmem:[#allocation2 + $0x68] sm:$0xff]
  %v1204 = vld [vmem:[#allocation2 + $0x70] sm:$0xff]
  %v1205 = vld [vmem:[#allocation2 + $0x78] sm:$0xff]
  %v1206 = vld [vmem:[#allocation2 + $0x80] sm:$0xff]
  %v1207 = vld [vmem:[#allocation2 + $0x88] sm:$0xff]
  %v1208 = vmul.f32 %v1190, %v1106
  %v1209 = vmul.f32 %v1191, %v1107
  %v1210 = vmul.f32 %v1192, %v1108
  %v1211 = vmul.f32 %v1193, %v1109
  %v1212 = vmul.f32 %v1194, %v1110
  %v1213 = vmul.f32 %v1195, %v1111
  %v1214 = vmul.f32 %v1196, %v1112
  %v1215 = vmul.f32 %v1197, %v1113
  %v1216 = vmul.f32 %v1198, %v1114
  %v1217 = vmul.f32 %v1199, %v1115
  %v1218 = vmul.f32 %v1200, %v1116
  %v1219 = vmul.f32 %v1201, %v1117
  %v1220 = vmul.f32 %v1202, %v1118
  %v1221 = vmul.f32 %v1203, %v1119
  %v1222 = vmul.f32 %v1204, %v1120
  %v1223 = vmul.f32 %v1205, %v1121
  %v1224 = vmul.f32 %v1206, %v1122
  %v1225 = vmul.f32 %v1207, %v1123
  %v1227 = vsel %vm442, %v1105, 0
  %1229 = vmatprep.subr.mxu0 %v1209
  %1230 = vmatpush1.msra.mxu0 %v1208
  %1231 = vmatprep.subr.mxu0 %v1211
  %1232 = vmatpush1.msra.mxu0 %v1210
  %1233 = vmatprep.subr.mxu0 %v1213
  %1234 = vmatpush1.msra.mxu0 %v1212
  %1235 = vmatprep.subr.mxu0 %v1215
  %1236 = vmatpush1.msra.mxu0 %v1214
  %1237 = vmatprep.subr.mxu0 %v1217
  %1238 = vmatpush1.msra.mxu0 %v1216
  %1239 = vmatprep.subr.mxu0 %v1219
  %1240 = vmatpush1.msra.mxu0 %v1218
  %1241 = vmatprep.subr.mxu0 %v1221
  %1242 = vmatpush1.msra.mxu0 %v1220
  %1243 = vmatprep.subr.mxu0 %v1223
  %1244 = vmatpush1.msra.mxu0 %v1222
  %1245 = vmatprep.subr.mxu0 %v1225
  %1246 = vmatpush1.msra.mxu0 %v1224
  %1247 = vmatprep.subr.mxu0 0.0
  %1248 = vmatpush1.msra.mxu0 0.0
  %1249 = vmatprep.subr.mxu0 0.0
  %1250 = vmatpush1.msra.mxu0 0.0
  %1251 = vmatprep.subr.mxu0 0.0
  %1252 = vmatpush1.msra.mxu0 0.0
  %1253 = vmatprep.subr.mxu0 0.0
  %1254 = vmatpush1.msra.mxu0 0.0
  %1255 = vmatprep.subr.mxu0 0.0
  %1256 = vmatpush1.msra.mxu0 0.0
  %1257 = vmatprep.subr.mxu0 0.0
  %1258 = vmatpush1.msra.mxu0 0.0
  %1259 = vmatprep.subr.mxu0 0.0
  %1260 = vmatpush1.msra.mxu0 0.0
  %1261 = vmatprep.subr.mxu0 0.0
  %1262 = vmatpush1.msra.mxu0 0.0
  %1263 = vmatprep.subr.mxu0 0.0
  %1264 = vmatpush1.msra.mxu0 0.0
  %1265 = vmatprep.subr.mxu0 0.0
  %1266 = vmatpush1.msra.mxu0 0.0
  %1267 = vmatprep.subr.mxu0 0.0
  %1268 = vmatpush1.msra.mxu0 0.0
  %1269 = vmatprep.subr.mxu0 0.0
  %1270 = vmatpush1.msra.mxu0 0.0
  %1271 = vmatprep.subr.mxu0 0.0
  %1272 = vmatpush1.msra.mxu0 0.0
  %1273 = vmatprep.subr.mxu0 0.0
  %1274 = vmatpush1.msra.mxu0 0.0
  %1275 = vmatprep.subr.mxu0 0.0
  %1276 = vmatpush1.msra.mxu0 0.0
  %1277 = vmatprep.subr.mxu0 0.0
  %1278 = vmatpush1.msra.mxu0 0.0
  %1279 = vmatprep.subr.mxu0 0.0
  %1280 = vmatpush1.msra.mxu0 0.0
  %1281 = vmatprep.subr.mxu0 0.0
  %1282 = vmatpush1.msra.mxu0 0.0
  %1283 = vmatprep.subr.mxu0 0.0
  %1284 = vmatpush1.msra.mxu0 0.0
  %1285 = vmatprep.subr.mxu0 0.0
  %1286 = vmatpush1.msra.mxu0 0.0
  %1287 = vmatprep.subr.mxu0 0.0
  %1288 = vmatpush1.msra.mxu0 0.0
  %1289 = vmatprep.subr.mxu0 0.0
  %1290 = vmatpush1.msra.mxu0 0.0
  %1291 = vmatprep.subr.mxu0 0.0
  %1292 = vmatpush1.msra.mxu0 0.0
  %1293 = vmatprep.mubr.f32.mxu0 0.0
  %1294 = vmatmul.mubr.f32.gmra.mrb[0].mxu0 %v1227
  %v1295 = vpop.f32.mrb[0].mxu0
  %v1296 = vadd.f32 0.0, %v1295
  %v1297 = vpop.f32.mrb[0].mxu0
  %v1298 = vadd.f32 0.0, %v1297
  %1299 = vdwg.mxu0
  %1300 = vmatprep.subr.mxu0 %v30
  %1301 = vmatpush1.msra.mxu0 %v29
  %1302 = vmatprep.subr.mxu0 %v34
  %1303 = vmatpush1.msra.mxu0 %v33
  %1304 = vmatprep.subr.mxu0 %v38
  %1305 = vmatpush1.msra.mxu0 %v37
  %1306 = vmatprep.subr.mxu0 %v42
  %1307 = vmatpush1.msra.mxu0 %v41
  %1308 = vmatprep.subr.mxu0 %v46
  %1309 = vmatpush1.msra.mxu0 %v45
  %1310 = vmatprep.subr.mxu0 %v50
  %1311 = vmatpush1.msra.mxu0 %v49
  %1312 = vmatprep.subr.mxu0 %v54
  %1313 = vmatpush1.msra.mxu0 %v53
  %1314 = vmatprep.subr.mxu0 %v58
  %1315 = vmatpush1.msra.mxu0 %v57
  %1316 = vmatprep.subr.mxu0 %v62
  %1317 = vmatpush1.msra.mxu0 %v61
  %1318 = vmatprep.subr.mxu0 %v66
  %1319 = vmatpush1.msra.mxu0 %v65
  %1320 = vmatprep.subr.mxu0 %v70
  %1321 = vmatpush1.msra.mxu0 %v69
  %1322 = vmatprep.subr.mxu0 %v74
  %1323 = vmatpush1.msra.mxu0 %v73
  %1324 = vmatprep.subr.mxu0 %v78
  %1325 = vmatpush1.msra.mxu0 %v77
  %1326 = vmatprep.subr.mxu0 %v82
  %1327 = vmatpush1.msra.mxu0 %v81
  %1328 = vmatprep.subr.mxu0 %v86
  %1329 = vmatpush1.msra.mxu0 %v85
  %1330 = vmatprep.subr.mxu0 %v90
  %1331 = vmatpush1.msra.mxu0 %v89
  %1332 = vmatprep.subr.mxu0 %v94
  %1333 = vmatpush1.msra.mxu0 %v93
  %1334 = vmatprep.subr.mxu0 %v98
  %1335 = vmatpush1.msra.mxu0 %v97
  %1336 = vmatprep.subr.mxu0 %v102
  %1337 = vmatpush1.msra.mxu0 %v101
  %1338 = vmatprep.subr.mxu0 %v106
  %1339 = vmatpush1.msra.mxu0 %v105
  %1340 = vmatprep.subr.mxu0 %v110
  %1341 = vmatpush1.msra.mxu0 %v109
  %1342 = vmatprep.subr.mxu0 %v114
  %1343 = vmatpush1.msra.mxu0 %v113
  %1344 = vmatprep.subr.mxu0 %v118
  %1345 = vmatpush1.msra.mxu0 %v117
  %1346 = vmatprep.subr.mxu0 %v122
  %1347 = vmatpush1.msra.mxu0 %v121
  %1348 = vmatprep.subr.mxu0 %v126
  %1349 = vmatpush1.msra.mxu0 %v125
  %1350 = vmatprep.subr.mxu0 %v130
  %1351 = vmatpush1.msra.mxu0 %v129
  %1352 = vmatprep.subr.mxu0 %v134
  %1353 = vmatpush1.msra.mxu0 %v133
  %1354 = vmatprep.subr.mxu0 %v138
  %1355 = vmatpush1.msra.mxu0 %v137
  %1356 = vmatprep.subr.mxu0 %v142
  %1357 = vmatpush1.msra.mxu0 %v141
  %1358 = vmatprep.subr.mxu0 %v146
  %1359 = vmatpush1.msra.mxu0 %v145
  %1360 = vmatprep.subr.mxu0 %v150
  %1361 = vmatpush1.msra.mxu0 %v149
  %1362 = vmatprep.subr.mxu0 %v154
  %1363 = vmatpush1.msra.mxu0 %v153
  %1364 = vmatprep.mubr.f32.mxu0 %v1298
  %1365 = vmatmul.mubr.f32.gmra.mrb[0].mxu0 %v1296
  %v1366 = vpop.f32.mrb[0].mxu0
  %v1367 = vadd.f32 0.0, %v1366
  %v1368 = vpop.f32.mrb[0].mxu0
  %v1369 = vadd.f32 0.0, %v1368
  %1370 = vdwg.mxu0
  %1371 = vmatprep.subr.mxu0 %v32
  %1372 = vmatpush1.msra.mxu0 %v31
  %1373 = vmatprep.subr.mxu0 %v36
  %1374 = vmatpush1.msra.mxu0 %v35
  %1375 = vmatprep.subr.mxu0 %v40
  %1376 = vmatpush1.msra.mxu0 %v39
  %1377 = vmatprep.subr.mxu0 %v44
  %1378 = vmatpush1.msra.mxu0 %v43
  %1379 = vmatprep.subr.mxu0 %v48
  %1380 = vmatpush1.msra.mxu0 %v47
  %1381 = vmatprep.subr.mxu0 %v52
  %1382 = vmatpush1.msra.mxu0 %v51
  %1383 = vmatprep.subr.mxu0 %v56
  %1384 = vmatpush1.msra.mxu0 %v55
  %1385 = vmatprep.subr.mxu0 %v60
  %1386 = vmatpush1.msra.mxu0 %v59
  %1387 = vmatprep.subr.mxu0 %v64
  %1388 = vmatpush1.msra.mxu0 %v63
  %1389 = vmatprep.subr.mxu0 %v68
  %1390 = vmatpush1.msra.mxu0 %v67
  %1391 = vmatprep.subr.mxu0 %v72
  %1392 = vmatpush1.msra.mxu0 %v71
  %1393 = vmatprep.subr.mxu0 %v76
  %1394 = vmatpush1.msra.mxu0 %v75
  %1395 = vmatprep.subr.mxu0 %v80
  %1396 = vmatpush1.msra.mxu0 %v79
  %1397 = vmatprep.subr.mxu0 %v84
  %1398 = vmatpush1.msra.mxu0 %v83
  %1399 = vmatprep.subr.mxu0 %v88
  %1400 = vmatpush1.msra.mxu0 %v87
  %1401 = vmatprep.subr.mxu0 %v92
  %1402 = vmatpush1.msra.mxu0 %v91
  %1403 = vmatprep.subr.mxu0 %v96
  %1404 = vmatpush1.msra.mxu0 %v95
  %1405 = vmatprep.subr.mxu0 %v100
  %1406 = vmatpush1.msra.mxu0 %v99
  %1407 = vmatprep.subr.mxu0 %v104
  %1408 = vmatpush1.msra.mxu0 %v103
  %1409 = vmatprep.subr.mxu0 %v108
  %1410 = vmatpush1.msra.mxu0 %v107
  %1411 = vmatprep.subr.mxu0 %v112
  %1412 = vmatpush1.msra.mxu0 %v111
  %1413 = vmatprep.subr.mxu0 %v116
  %1414 = vmatpush1.msra.mxu0 %v115
  %1415 = vmatprep.subr.mxu0 %v120
  %1416 = vmatpush1.msra.mxu0 %v119
  %1417 = vmatprep.subr.mxu0 %v124
  %1418 = vmatpush1.msra.mxu0 %v123
  %1419 = vmatprep.subr.mxu0 %v128
  %1420 = vmatpush1.msra.mxu0 %v127
  %1421 = vmatprep.subr.mxu0 %v132
  %1422 = vmatpush1.msra.mxu0 %v131
  %1423 = vmatprep.subr.mxu0 %v136
  %1424 = vmatpush1.msra.mxu0 %v135
  %1425 = vmatprep.subr.mxu0 %v140
  %1426 = vmatpush1.msra.mxu0 %v139
  %1427 = vmatprep.subr.mxu0 %v144
  %1428 = vmatpush1.msra.mxu0 %v143
  %1429 = vmatprep.subr.mxu0 %v148
  %1430 = vmatpush1.msra.mxu0 %v147
  %1431 = vmatprep.subr.mxu0 %v152
  %1432 = vmatpush1.msra.mxu0 %v151
  %1433 = vmatprep.subr.mxu0 %v156
  %1434 = vmatpush1.msra.mxu0 %v155
  %1435 = vmatprep.mubr.f32.mxu0 %v1298
  %1436 = vmatmul.mubr.f32.gmra.mrb[0].mxu0 %v1296
  %v1437 = vpop.f32.mrb[0].mxu0
  %v1438 = vadd.f32 0.0, %v1437
  %v1439 = vpop.f32.mrb[0].mxu0
  %v1440 = vadd.f32 0.0, %v1439
  %1441 = vdwg.mxu0
  %v1442 = vrot.slane %v1438, 4
  %v1443 = vsel %vm659, %v1442, %v1438
  %v1444 = vrot.slane %v1440, 4
  %v1445 = vsel %vm659, %v1444, %v1440
  %v1446 = vrot.slane %v1443, 4
  %v1447 = vrot.slane %v1445, 4
  %v1448 = vsel %vm659, %v1446, %v1438
  %v1449 = vsel %vm659, %v1447, %v1440
  %v1452 = vrot.slane %v1448, 2
  %v1453 = vrot.slane %v1449, 2
  %v1456 = vmul.f32 %v669, %v1452
  %v1457 = vmul.f32 %v669, %v1453
  %v1458 = vsub.f32 %v1367, %v1456
  %v1459 = vsub.f32 %v1369, %v1457
  %v1460 = vmul.f32 %v1458, 0.00390625
  %v1461 = vmul.f32 %v1459, 0.00390625
  %v1462 = vld [vmem:[%s6] sm:$0xf]
  %v1463 = vld [vmem:[%s3] sm:$0xff]
  %v1464 = vld [vmem:[%s3 + $0x8] sm:$0xff]
  %v1465 = vld [vmem:[%s3 + $0x10] sm:$0xff]
  %v1466 = vld [vmem:[%s3 + $0x18] sm:$0xff]
  %v1467 = vld [vmem:[%s3 + $0x20] sm:$0xff]
  %v1468 = vld [vmem:[%s3 + $0x28] sm:$0xff]
  %v1469 = vld [vmem:[%s3 + $0x30] sm:$0xff]
  %v1470 = vld [vmem:[%s3 + $0x38] sm:$0xff]
  %v1471 = vld [vmem:[%s3 + $0x40] sm:$0xff]
  %v1472 = vld [vmem:[%s3 + $0x48] sm:$0xff]
  %v1473 = vld [vmem:[%s3 + $0x50] sm:$0xff]
  %v1474 = vld [vmem:[%s3 + $0x58] sm:$0xff]
  %v1475 = vld [vmem:[%s3 + $0x60] sm:$0xff]
  %v1476 = vld [vmem:[%s3 + $0x68] sm:$0xff]
  %v1477 = vld [vmem:[%s3 + $0x70] sm:$0xff]
  %v1478 = vld [vmem:[%s3 + $0x78] sm:$0xff]
  %v1479 = vld [vmem:[%s3 + $0x80] sm:$0xff]
  %v1480 = vld [vmem:[%s3 + $0x88] sm:$0xff]
  %1481 = vrot.lane.b32.xlu0 %v955, 17
  %v1482 = vpop.permute.xlu0 %1481
  %1483 = vrot.lane.b32.xlu0 %v956, 17
  %v1484 = vpop.permute.xlu0 %1483
  %v1485 = vsel %vm336, %v1482, %v1484
  %v1486 = vsel %vm336, %v1484, %v1482
  %1487 = vst [vmem:[#allocation2] sm:$0xff] %v1486
  %1488 = vst [vmem:[#allocation2 + $0x8] sm:$0xff] %v1485
  %1489 = vrot.lane.b32.xlu0 %v955, 16
  %v1490 = vpop.permute.xlu0 %1489
  %1491 = vrot.lane.b32.xlu0 %v956, 16
  %v1492 = vpop.permute.xlu0 %1491
  %v1493 = vsel %vm345, %v1490, %v1492
  %v1494 = vsel %vm345, %v1492, %v1490
  %1495 = vst [vmem:[#allocation2 + $0x10] sm:$0xff] %v1494
  %1496 = vst [vmem:[#allocation2 + $0x18] sm:$0xff] %v1493
  %1497 = vrot.lane.b32.xlu0 %v955, 15
  %v1498 = vpop.permute.xlu0 %1497
  %1499 = vrot.lane.b32.xlu0 %v956, 15
  %v1500 = vpop.permute.xlu0 %1499
  %v1501 = vsel %vm354, %v1498, %v1500
  %v1502 = vsel %vm354, %v1500, %v1498
  %1503 = vst [vmem:[#allocation2 + $0x20] sm:$0xff] %v1502
  %1504 = vst [vmem:[#allocation2 + $0x28] sm:$0xff] %v1501
  %1505 = vrot.lane.b32.xlu0 %v955, 1
  %v1506 = vpop.permute.xlu0 %1505
  %1507 = vrot.lane.b32.xlu0 %v956, 1
  %v1508 = vpop.permute.xlu0 %1507
  %v1509 = vsel %vm363, %v1506, %v1508
  %v1510 = vsel %vm363, %v1508, %v1506
  %1511 = vst [vmem:[#allocation2 + $0x30] sm:$0xff] %v1510
  %1512 = vst [vmem:[#allocation2 + $0x38] sm:$0xff] %v1509
  %1513 = vst [vmem:[#allocation2 + $0x40] sm:$0xff] %v955
  %1514 = vst [vmem:[#allocation2 + $0x48] sm:$0xff] %v956
  %1515 = vrot.lane.b32.xlu0 %v955, 127
  %v1516 = vpop.permute.xlu0 %1515
  %1517 = vrot.lane.b32.xlu0 %v956, 127
  %v1518 = vpop.permute.xlu0 %1517
  %v1519 = vsel %vm374, %v1516, %v1518
  %v1520 = vsel %vm374, %v1518, %v1516
  %1521 = vst [vmem:[#allocation2 + $0x50] sm:$0xff] %v1519
  %1522 = vst [vmem:[#allocation2 + $0x58] sm:$0xff] %v1520
  %1523 = vrot.lane.b32.xlu0 %v955, 113
  %v1524 = vpop.permute.xlu0 %1523
  %1525 = vrot.lane.b32.xlu0 %v956, 113
  %v1526 = vpop.permute.xlu0 %1525
  %v1527 = vsel %vm383, %v1524, %v1526
  %v1528 = vsel %vm383, %v1526, %v1524
  %1529 = vst [vmem:[#allocation2 + $0x60] sm:$0xff] %v1527
  %1530 = vst [vmem:[#allocation2 + $0x68] sm:$0xff] %v1528
  %1531 = vrot.lane.b32.xlu0 %v955, 112
  %v1532 = vpop.permute.xlu0 %1531
  %1533 = vrot.lane.b32.xlu0 %v956, 112
  %v1534 = vpop.permute.xlu0 %1533
  %v1535 = vsel %vm392, %v1532, %v1534
  %v1536 = vsel %vm392, %v1534, %v1532
  %1537 = vst [vmem:[#allocation2 + $0x70] sm:$0xff] %v1535
  %1538 = vst [vmem:[#allocation2 + $0x78] sm:$0xff] %v1536
  %1539 = vrot.lane.b32.xlu0 %v955, 111
  %v1540 = vpop.permute.xlu0 %1539
  %1541 = vrot.lane.b32.xlu0 %v956, 111
  %v1542 = vpop.permute.xlu0 %1541
  %v1543 = vsel %vm401, %v1540, %v1542
  %v1544 = vsel %vm401, %v1542, %v1540
  %1545 = vst [vmem:[#allocation2 + $0x80] sm:$0xff] %v1543
  %1546 = vst [vmem:[#allocation2 + $0x88] sm:$0xff] %v1544
  %v1547 = vld [vmem:[#allocation2] sm:$0xff]
  %v1548 = vld [vmem:[#allocation2 + $0x8] sm:$0xff]
  %v1549 = vld [vmem:[#allocation2 + $0x10] sm:$0xff]
  %v1550 = vld [vmem:[#allocation2 + $0x18] sm:$0xff]
  %v1551 = vld [vmem:[#allocation2 + $0x20] sm:$0xff]
  %v1552 = vld [vmem:[#allocation2 + $0x28] sm:$0xff]
  %v1553 = vld [vmem:[#allocation2 + $0x30] sm:$0xff]
  %v1554 = vld [vmem:[#allocation2 + $0x38] sm:$0xff]
  %v1555 = vld [vmem:[#allocation2 + $0x40] sm:$0xff]
  %v1556 = vld [vmem:[#allocation2 + $0x48] sm:$0xff]
  %v1557 = vld [vmem:[#allocation2 + $0x50] sm:$0xff]
  %v1558 = vld [vmem:[#allocation2 + $0x58] sm:$0xff]
  %v1559 = vld [vmem:[#allocation2 + $0x60] sm:$0xff]
  %v1560 = vld [vmem:[#allocation2 + $0x68] sm:$0xff]
  %v1561 = vld [vmem:[#allocation2 + $0x70] sm:$0xff]
  %v1562 = vld [vmem:[#allocation2 + $0x78] sm:$0xff]
  %v1563 = vld [vmem:[#allocation2 + $0x80] sm:$0xff]
  %v1564 = vld [vmem:[#allocation2 + $0x88] sm:$0xff]
  %v1565 = vmul.f32 %v1547, %v1463
  %v1566 = vmul.f32 %v1548, %v1464
  %v1567 = vmul.f32 %v1549, %v1465
  %v1568 = vmul.f32 %v1550, %v1466
  %v1569 = vmul.f32 %v1551, %v1467
  %v1570 = vmul.f32 %v1552, %v1468
  %v1571 = vmul.f32 %v1553, %v1469
  %v1572 = vmul.f32 %v1554, %v1470
  %v1573 = vmul.f32 %v1555, %v1471
  %v1574 = vmul.f32 %v1556, %v1472
  %v1575 = vmul.f32 %v1557, %v1473
  %v1576 = vmul.f32 %v1558, %v1474
  %v1577 = vmul.f32 %v1559, %v1475
  %v1578 = vmul.f32 %v1560, %v1476
  %v1579 = vmul.f32 %v1561, %v1477
  %v1580 = vmul.f32 %v1562, %v1478
  %v1581 = vmul.f32 %v1563, %v1479
  %v1582 = vmul.f32 %v1564, %v1480
  %v1584 = vsel %vm442, %v1462, 0
  %1586 = vmatprep.subr.mxu0 %v1566
  %1587 = vmatpush1.msra.mxu0 %v1565
  %1588 = vmatprep.subr.mxu0 %v1568
  %1589 = vmatpush1.msra.mxu0 %v1567
  %1590 = vmatprep.subr.mxu0 %v1570
  %1591 = vmatpush1.msra.mxu0 %v1569
  %1592 = vmatprep.subr.mxu0 %v1572
  %1593 = vmatpush1.msra.mxu0 %v1571
  %1594 = vmatprep.subr.mxu0 %v1574
  %1595 = vmatpush1.msra.mxu0 %v1573
  %1596 = vmatprep.subr.mxu0 %v1576
  %1597 = vmatpush1.msra.mxu0 %v1575
  %1598 = vmatprep.subr.mxu0 %v1578
  %1599 = vmatpush1.msra.mxu0 %v1577
  %1600 = vmatprep.subr.mxu0 %v1580
  %1601 = vmatpush1.msra.mxu0 %v1579
  %1602 = vmatprep.subr.mxu0 %v1582
  %1603 = vmatpush1.msra.mxu0 %v1581
  %1604 = vmatprep.subr.mxu0 0.0
  %1605 = vmatpush1.msra.mxu0 0.0
  %1606 = vmatprep.subr.mxu0 0.0
  %1607 = vmatpush1.msra.mxu0 0.0
  %1608 = vmatprep.subr.mxu0 0.0
  %1609 = vmatpush1.msra.mxu0 0.0
  %1610 = vmatprep.subr.mxu0 0.0
  %1611 = vmatpush1.msra.mxu0 0.0
  %1612 = vmatprep.subr.mxu0 0.0
  %1613 = vmatpush1.msra.mxu0 0.0
  %1614 = vmatprep.subr.mxu0 0.0
  %1615 = vmatpush1.msra.mxu0 0.0
  %1616 = vmatprep.subr.mxu0 0.0
  %1617 = vmatpush1.msra.mxu0 0.0
  %1618 = vmatprep.subr.mxu0 0.0
  %1619 = vmatpush1.msra.mxu0 0.0
  %1620 = vmatprep.subr.mxu0 0.0
  %1621 = vmatpush1.msra.mxu0 0.0
  %1622 = vmatprep.subr.mxu0 0.0
  %1623 = vmatpush1.msra.mxu0 0.0
  %1624 = vmatprep.subr.mxu0 0.0
  %1625 = vmatpush1.msra.mxu0 0.0
  %1626 = vmatprep.subr.mxu0 0.0
  %1627 = vmatpush1.msra.mxu0 0.0
  %1628 = vmatprep.subr.mxu0 0.0
  %1629 = vmatpush1.msra.mxu0 0.0
  %1630 = vmatprep.subr.mxu0 0.0
  %1631 = vmatpush1.msra.mxu0 0.0
  %1632 = vmatprep.subr.mxu0 0.0
  %1633 = vmatpush1.msra.mxu0 0.0
  %1634 = vmatprep.subr.mxu0 0.0
  %1635 = vmatpush1.msra.mxu0 0.0
  %1636 = vmatprep.subr.mxu0 0.0
  %1637 = vmatpush1.msra.mxu0 0.0
  %1638 = vmatprep.subr.mxu0 0.0
  %1639 = vmatpush1.msra.mxu0 0.0
  %1640 = vmatprep.subr.mxu0 0.0
  %1641 = vmatpush1.msra.mxu0 0.0
  %1642 = vmatprep.subr.mxu0 0.0
  %1643 = vmatpush1.msra.mxu0 0.0
  %1644 = vmatprep.subr.mxu0 0.0
  %1645 = vmatpush1.msra.mxu0 0.0
  %1646 = vmatprep.subr.mxu0 0.0
  %1647 = vmatpush1.msra.mxu0 0.0
  %1648 = vmatprep.subr.mxu0 0.0
  %1649 = vmatpush1.msra.mxu0 0.0
  %1650 = vmatprep.mubr.f32.mxu0 0.0
  %1651 = vmatmul.mubr.f32.gmra.mrb[0].mxu0 %v1584
  %v1652 = vpop.f32.mrb[0].mxu0
  %v1653 = vadd.f32 0.0, %v1652
  %v1654 = vpop.f32.mrb[0].mxu0
  %v1655 = vadd.f32 0.0, %v1654
  %1656 = vdwg.mxu0
  %v1657 = vsel %vm877, %v1653, 0.0
  %v1658 = vsel %vm877, %v1655, 0.0
  %v1659 = vadd.f32 %v1657, %v1658
  %1660 = vadd.xlane.f32.xlu0 %v1659
  %v1661 = vpop.xlane.xlu0 %1660
  %v1662 = vmul.f32 %v1661, %v883
  %v1663 = vsub.f32 %v1653, %v1662
  %v1664 = vsub.f32 %v1655, %v1662
  %v1665 = vmul.f32 %v1663, %v1663
  %v1666 = vmul.f32 %v1664, %v1664
  %v1667 = vsel %vm877, %v1665, 0.0
  %v1668 = vsel %vm877, %v1666, 0.0
  %v1669 = vadd.f32 %v1667, %v1668
  %1670 = vadd.xlane.f32.xlu0 %v1669
  %v1671 = vpop.xlane.xlu0 %1670
  %v1672 = vmul.f32 %v1671, %v883
  %v1673 = vadd.f32 %v1672, 1e-05
  %v1674 = vrsqrt.pop %v1673
  %v1675 = vmul.f32 %v1663, %v1674
  %v1676 = vmul.f32 %v1664, %v1674
  %vm1677 = vcmp.ge.f32.partialorder %v1675, 0.0
  %vm1678 = vcmp.ge.f32.partialorder %v1676, 0.0
  %v1679 = vmul.f32 %v1675, 0.2
  %v1680 = vmul.f32 %v1676, 0.2
  %v1681 = vsel %vm1677, %v1675, %v1679
  %v1682 = vsel %vm1678, %v1676, %v1680
  %v1685 = vcombine.low %v1681, %v1682
  %1687 = vst [vmem:[%s8] sm:$0xff] %v1685
  %v1688 = vsel %vm877, %v1460, 0.0
  %v1689 = vsel %vm877, %v1461, 0.0
  %v1690 = vadd.f32 %v1688, %v1689
  %1691 = vadd.xlane.f32.xlu0 %v1690
  %v1692 = vpop.xlane.xlu0 %1691
  %v1693 = vmul.f32 %v1692, %v883
  %v1694 = vsub.f32 %v1460, %v1693
  %v1695 = vsub.f32 %v1461, %v1693
  %v1696 = vmul.f32 %v1694, %v1694
  %v1697 = vmul.f32 %v1695, %v1695
  %v1698 = vsel %vm877, %v1696, 0.0
  %v1699 = vsel %vm877, %v1697, 0.0
  %v1700 = vadd.f32 %v1698, %v1699
  %1701 = vadd.xlane.f32.xlu0 %v1700
  %v1702 = vpop.xlane.xlu0 %1701
  %v1703 = vmul.f32 %v1702, %v883
  %v1704 = vadd.f32 %v1703, 1e-05
  %v1705 = vrsqrt.pop %v1704
  %v1706 = vmul.f32 %v1694, %v1705
  %v1707 = vmul.f32 %v1695, %v1705
  %vm1708 = vcmp.ge.f32.partialorder %v1706, 0.0
  %vm1709 = vcmp.ge.f32.partialorder %v1707, 0.0
  %v1710 = vmul.f32 %v1706, 0.2
  %v1711 = vmul.f32 %v1707, 0.2
  %v1712 = vsel %vm1708, %v1706, %v1710
  %v1713 = vsel %vm1709, %v1707, %v1711
  %v1716 = vcombine.low %v1712, %v1713
  %s1718 = scalar_lea.vmem %s8, 8
  %1719 = vst [vmem:[%s1718] sm:$0xff] %v1716
  // Predicated region
  $region34: #{multidomain_conv_block.1} parent=0 // pred_check
    _
  $region35: #{multidomain_conv_block.1} parent=0 // pred_check_branch
    %1721 = sbr.rel (0) target = $region37
  $region36: #{multidomain_conv_block.1} parent=0 // pred_region
    _
  $region37: #{multidomain_conv_block.1} parent=0 // pred_fallthru
    _
  // Predicated region
  $region38: #{multidomain_conv_block.1} parent=0 // pred_check
    _
  $region39: #{multidomain_conv_block.1} parent=0 // pred_check_branch
    %1723 = sbr.rel (0) target = $region41
  $region40: #{multidomain_conv_block.1} parent=0 // pred_region
    _
  $region41: #{multidomain_conv_block.1} parent=0 // pred_fallthru
    _

</llo_original>
